<compile_context>
chip_gen: v7x
topology: tpu7x:2x2x1
jax: 0.10.0
libtpu: 0.0.40
codegen_flags: <defaults>
</compile_context>

<pallas_src>
import functools

import jax
import jax.numpy as jnp
from jax import lax
from jax.experimental import pallas as pl
from jax.experimental.pallas import tpu as pltpu

_LANE = 128
_NEG = -1e30  # pushes padded tag lanes out of the log-softmax


def _round_up(x, m):
    return ((x + m - 1) // m) * m


def lstm_tagger_kernel(x_ref, wih_ref, whh_ref, b_ref, wtag_ref, btag_ref,
                       out_ref, hs_ref, *, seq_len, batch):
    """One sentence tile: hoisted input projection + unrolled batched LSTM
    recurrence + hidden2tag + log_softmax."""
    Hp = whh_ref.shape[0]            # hidden dim padded to a multiple of 128

    # --- Hoisted input projection: one (T*Bt, Ep) x (Ep, 4Hp) bf16 MXU matmul ---
    gates_x = (jnp.dot(x_ref[...], wih_ref[...],
                       preferred_element_type=jnp.float32)
               + b_ref[...])                                     # (T*Bt, 4Hp) f32

    whh = whh_ref[...]                                           # (Hp, 4Hp) bf16, hoisted

    h = jnp.zeros((batch, Hp), jnp.float32)
    c = jnp.zeros((batch, Hp), jnp.float32)
    # Fully unrolled recurrence (T static & small): only the (Bt,Hp)@(Hp,4Hp) matmul,
    # the nonlinearities and the elementwise cell update remain on the serial path.
    for t in range(seq_len):
        gates = gates_x[t * batch:(t + 1) * batch, :] + jnp.dot(
            h.astype(jnp.bfloat16), whh,
            preferred_element_type=jnp.float32)                  # (Bt, 4Hp) f32
        # PyTorch nn.LSTM gate order: input, forget, cell(g), output.
        # All slices are 128-lane aligned (Hp % 128 == 0) -> full-vreg EUP ops.
        sig_if = jax.nn.sigmoid(gates[:, 0:2 * Hp])              # i|f in one pass
        i_g = sig_if[:, 0:Hp]
        f_g = sig_if[:, Hp:2 * Hp]
        g_g = jnp.tanh(gates[:, 2 * Hp:3 * Hp])
        o_g = jax.nn.sigmoid(gates[:, 3 * Hp:4 * Hp])
        c = f_g * c + i_g * g_g
        h = o_g * jnp.tanh(c)
        hs_ref[t * batch:(t + 1) * batch, :] = h                 # scratch row block

    # hidden2tag + numerically stable log_softmax(dim=-1).  Padded tag lanes carry
    # a -1e30 bias so they contribute exp(...) == 0 and don't disturb the max.
    tag_space = (jnp.dot(hs_ref[...].astype(jnp.bfloat16), wtag_ref[...],
                         preferred_element_type=jnp.float32)
                 + btag_ref[...])                                # (T*Bt, Tgp) f32
    m = jnp.max(tag_space, axis=-1, keepdims=True)
    lse = m + jnp.log(jnp.sum(jnp.exp(tag_space - m), axis=-1, keepdims=True))
    out_ref[...] = tag_space - lse


def _pad_cols(x, target, value=0.0):
    pad = target - x.shape[-1]
    if pad == 0:
        return x
    cfg = [(0, 0)] * (x.ndim - 1) + [(0, pad)]
    return jnp.pad(x, cfg, constant_values=value)


def _pad_gate_blocks(w, hp):
    # (..., 4H) -> (..., 4Hp): zero-pad each of the i/f/g/o blocks independently.
    return jnp.concatenate(
        [_pad_cols(blk, hp) for blk in jnp.split(w, 4, axis=-1)], axis=-1)


@functools.partial(jax.jit, static_argnames=("batch_tile",))
def lstm_tagger_forward(embeds, w_ih_T, w_hh_T, b, w_tag_T, b_tag, *,
                        batch_tile=8):
    """embeds: (S, T, E) batch of sentences, or (T, E) for a single sentence
    (matches the nn.Module forward).  Returns (S, T, Tg) / (T, Tg) log-probs."""
    single = (embeds.ndim == 2)
    if single:
        embeds = embeds[None]
    S, T, E = embeds.shape
    H = w_hh_T.shape[0]
    Tg = w_tag_T.shape[1]
    Hp = _round_up(H, _LANE)
    Tgp = _round_up(Tg, _LANE)
    Ep = _round_up(E, _LANE)
    Bt = batch_tile
    Sp = _round_up(S, Bt)
    nt = Sp // Bt

    # Parameters: pad to lane-dense tiles; MXU operands cast to bf16, biases stay f32.
    # Padded hidden lanes provably stay zero through the recurrence
    # (gates_pad = 0 -> f=i=o=0.5, g=0 -> c_pad = h_pad = 0).
    w_ih_p = jnp.pad(_pad_gate_blocks(w_ih_T, Hp),
                     ((0, Ep - E), (0, 0))).astype(jnp.bfloat16)   # (Ep, 4Hp)
    w_hh_p = jnp.pad(_pad_gate_blocks(w_hh_T, Hp),
                     ((0, Hp - H), (0, 0))).astype(jnp.bfloat16)   # (Hp, 4Hp)
    b_p = _pad_gate_blocks(b, Hp)                                  # (1, 4Hp) f32
    w_tag_p = jnp.pad(w_tag_T,
                      ((0, Hp - H), (0, Tgp - Tg))).astype(jnp.bfloat16)  # (Hp, Tgp)
    b_tag_p = _pad_cols(b_tag, Tgp, value=_NEG)                    # (1, Tgp) f32

    # Activations: pad sentence count to a multiple of Bt, lay each tile out
    # time-major (row = t*Bt + b_local) so per-step gate slices are contiguous.
    x = jnp.pad(embeds, ((0, Sp - S), (0, 0), (0, Ep - E)))        # (Sp, T, Ep)
    x = x.reshape(nt, Bt, T, Ep).transpose(0, 2, 1, 3).reshape(nt * T * Bt, Ep)
    x = x.astype(jnp.bfloat16)

    kernel = functools.partial(lstm_tagger_kernel, seq_len=T, batch=Bt)
    out = pl.pallas_call(
        kernel,
        out_shape=jax.ShapeDtypeStruct((nt * T * Bt, Tgp), jnp.float32),
        grid=(nt,),
        in_specs=[
            # Activations advance per sentence tile.
            pl.BlockSpec((T * Bt, Ep), lambda i: (i, 0)),
            # Weights / biases: constant block index -> fetched once, VMEM-resident.
            pl.BlockSpec((Ep, 4 * Hp), lambda i: (0, 0)),
            pl.BlockSpec((Hp, 4 * Hp), lambda i: (0, 0)),
            pl.BlockSpec((1, 4 * Hp), lambda i: (0, 0)),
            pl.BlockSpec((Hp, Tgp), lambda i: (0, 0)),
            pl.BlockSpec((1, Tgp), lambda i: (0, 0)),
        ],
        out_specs=pl.BlockSpec((T * Bt, Tgp), lambda i: (i, 0)),
        scratch_shapes=[pltpu.VMEM((T * Bt, Hp), jnp.float32)],
        compiler_params=pltpu.CompilerParams(
            dimension_semantics=("parallel",)),   # sentence tiles shard across TCs
    )(x, w_ih_p, w_hh_p, b_p, w_tag_p, b_tag_p)

    out = out.reshape(nt, T, Bt, Tgp).transpose(0, 2, 1, 3).reshape(Sp, T, Tgp)
    out = out[:S, :, :Tg]
    return out[0] if single else out


def reference_forward(embeds, w_ih_T, w_hh_T, b, w_tag_T, b_tag):
    """Pure-JAX f32 reference (mirrors torch nn.LSTM + Linear + log_softmax)."""
    H = w_hh_T.shape[0]

    def one_sentence(x):
        def step(carry, x_t):
            h, c = carry
            gates = x_t[None, :] @ w_ih_T + h @ w_hh_T + b
            i_g = jax.nn.sigmoid(gates[:, 0:H])
            f_g = jax.nn.sigmoid(gates[:, H:2 * H])
            g_g = jnp.tanh(gates[:, 2 * H:3 * H])
            o_g = jax.nn.sigmoid(gates[:, 3 * H:4 * H])
            c_new = f_g * c + i_g * g_g
            h_new = o_g * jnp.tanh(c_new)
            return (h_new, c_new), h_new[0]

        h0 = jnp.zeros((1, H), jnp.float32)
        c0 = jnp.zeros((1, H), jnp.float32)
        _, hs = lax.scan(step, (h0, c0), x)
        tag_space = hs @ w_tag_T + b_tag
        return jax.nn.log_softmax(tag_space, axis=1)

    return jax.vmap(one_sentence)(embeds)


if __name__ == "__main__":
    # Small synthetic setup consistent with LSTMTagger(word_dict, E, H, V, Tg).
    seq_len = 8          # len(words)
    emb_dim = 32         # embedding_dim
    hidden = 32          # hidden_dim
    vocab = 20           # vocab_size (len(word_dict))
    tagset = 8           # tagset_size
    n_sent = 16          # batch of sentences fed through the batched kernel

    key = jax.random.PRNGKey(0)
    keys = jax.random.split(key, 8)

    # TODO(synk): the real module loads pretrained vectors from 'wiki_ko.vec' and maps
    # words through a Python dict; synthesized deterministically here instead, and the
    # embedding row gather is done in plain JAX outside the kernel.
    emb_table = jax.random.normal(keys[0], (vocab, emb_dim), jnp.float32)
    word_idxs = jax.random.randint(keys[1], (n_sent, seq_len), 0, vocab)
    embeds = emb_table[word_idxs]                         # (S, T, E)

    # LSTM parameters (PyTorch shapes: weight_ih (4H,E), weight_hh (4H,H), biases (4H,))
    scale = 1.0 / jnp.sqrt(hidden)
    w_ih = jax.random.uniform(keys[2], (4 * hidden, emb_dim), jnp.float32, -scale, scale)
    w_hh = jax.random.uniform(keys[3], (4 * hidden, hidden), jnp.float32, -scale, scale)
    b_ih = jax.random.uniform(keys[4], (4 * hidden,), jnp.float32, -scale, scale)
    b_hh = jax.random.uniform(keys[5], (4 * hidden,), jnp.float32, -scale, scale)
    # Linear hidden2tag: weight (Tg, H), bias (Tg,)
    w_tag = jax.random.uniform(keys[6], (tagset, hidden), jnp.float32, -scale, scale)
    b_tag = jax.random.uniform(keys[7], (tagset,), jnp.float32, -scale, scale)

    # Pre-transpose / combine for the kernel layout.
    w_ih_T = w_ih.T                                       # (E, 4H)
    w_hh_T = w_hh.T                                       # (H, 4H)
    b_comb = (b_ih + b_hh)[None, :]                       # (1, 4H)
    w_tag_T = w_tag.T                                     # (H, Tg)
    b_tag2 = b_tag[None, :]                               # (1, Tg)

    # Batched path: 16 sentences, 2 grid tiles of 8 sentences each.
    out = lstm_tagger_forward(embeds, w_ih_T, w_hh_T, b_comb, w_tag_T, b_tag2,
                              batch_tile=8)
    out = jax.block_until_ready(out)
    assert out.shape == (n_sent, seq_len, tagset)

    ref = reference_forward(embeds, w_ih_T, w_hh_T, b_comb, w_tag_T, b_tag2)
    # bf16 MXU operands -> tolerance loosened vs the pure-f32 reference.
    assert jnp.allclose(out, ref, atol=5e-2, rtol=0.0), "mismatch vs JAX reference"

    # Single-sentence path (matches the nn.Module forward signature).
    out1 = lstm_tagger_forward(embeds[0], w_ih_T, w_hh_T, b_comb, w_tag_T, b_tag2,
                               batch_tile=8)
    out1 = jax.block_until_ready(out1)
    assert out1.shape == (seq_len, tagset)
    assert jnp.allclose(out1, ref[0], atol=5e-2, rtol=0.0), "single-sentence mismatch"

    print("KERNEL_OK")
</pallas_src>

<mosaic_0001>
module attributes {stable_mosaic.version = 11 : i64} {
  func.func @lstm_tagger_kernel(%arg0: i32, %arg1: memref<64x128xbf16, #tpu.memory_space<vmem>>, %arg2: memref<128x512xbf16, #tpu.memory_space<vmem>>, %arg3: memref<128x512xbf16, #tpu.memory_space<vmem>>, %arg4: memref<1x512xf32, #tpu.memory_space<vmem>>, %arg5: memref<128x128xbf16, #tpu.memory_space<vmem>>, %arg6: memref<1x128xf32, #tpu.memory_space<vmem>>, %arg7: memref<64x128xf32, #tpu.memory_space<vmem>>, %arg8: memref<64x128xf32, #tpu.memory_space<vmem>>) attributes {dimension_semantics = [#tpu.dimension_semantics<parallel>], iteration_bounds = array<i64: 2>, scalar_prefetch = 0 : i64, scratch_operands = 1 : i64, tpu.core_type = #tpu.core_type<tc>, window_params = [{transform_indices = @transform_0, window_bounds = array<i64: 64, 128>}, {pipeline_mode = #tpu.pipeline_mode<synchronous>, transform_indices = @transform_1, window_bounds = array<i64: 128, 512>}, {pipeline_mode = #tpu.pipeline_mode<synchronous>, transform_indices = @transform_2, window_bounds = array<i64: 128, 512>}, {pipeline_mode = #tpu.pipeline_mode<synchronous>, transform_indices = @transform_3, window_bounds = array<i64: 1, 512>}, {pipeline_mode = #tpu.pipeline_mode<synchronous>, transform_indices = @transform_4, window_bounds = array<i64: 128, 128>}, {pipeline_mode = #tpu.pipeline_mode<synchronous>, transform_indices = @transform_5, window_bounds = array<i64: 1, 128>}, {transform_indices = @transform_6, window_bounds = array<i64: 64, 128>}]} {
    %c0 = arith.constant 0 : index
    %c0_0 = arith.constant 0 : index
    %0 = vector.load %arg1[%c0, %c0_0] : memref<64x128xbf16, #tpu.memory_space<vmem>>, vector<64x128xbf16>
    %c0_1 = arith.constant 0 : index
    %c0_2 = arith.constant 0 : index
    %1 = vector.load %arg2[%c0_1, %c0_2] : memref<128x512xbf16, #tpu.memory_space<vmem>>, vector<128x512xbf16>
    %cst = arith.constant dense<0.000000e+00> : vector<64x512xf32>
    %2 = tpu.matmul %0, %1, %cst {dimension_numbers = #tpu.dot_dimension_numbers<[1], [0], [0], [1], [0, 0, 1, 1], [], []>} : vector<64x128xbf16>, vector<128x512xbf16>, vector<64x512xf32> -> vector<64x512xf32>
    %c0_3 = arith.constant 0 : index
    %c0_4 = arith.constant 0 : index
    %3 = vector.load %arg4[%c0_3, %c0_4] : memref<1x512xf32, #tpu.memory_space<vmem>>, vector<1x512xf32>
    %4 = vector.broadcast %3 : vector<1x512xf32> to vector<64x512xf32>
    %5 = arith.addf %2, %4 : vector<64x512xf32>
    %c0_5 = arith.constant 0 : index
    %c0_6 = arith.constant 0 : index
    %6 = vector.load %arg3[%c0_5, %c0_6] : memref<128x512xbf16, #tpu.memory_space<vmem>>, vector<128x512xbf16>
    %cst_7 = arith.constant 0.000000e+00 : f32
    %7 = vector.broadcast %cst_7 : f32 to vector<8x128xf32>
    %cst_8 = arith.constant 0.000000e+00 : f32
    %8 = vector.broadcast %cst_8 : f32 to vector<8x128xf32>
    %9 = vector.extract_strided_slice %5 {offsets = [0, 0], sizes = [8, 512], strides = [1, 1]} : vector<64x512xf32> to vector<8x512xf32>
    %10 = arith.truncf %7 : vector<8x128xf32> to vector<8x128xbf16>
    %cst_9 = arith.constant dense<0.000000e+00> : vector<8x512xf32>
    %11 = tpu.matmul %10, %6, %cst_9 {dimension_numbers = #tpu.dot_dimension_numbers<[1], [0], [0], [1], [0, 0, 1, 1], [], []>} : vector<8x128xbf16>, vector<128x512xbf16>, vector<8x512xf32> -> vector<8x512xf32>
    %12 = arith.addf %9, %11 : vector<8x512xf32>
    %13 = vector.extract_strided_slice %12 {offsets = [0, 0], sizes = [8, 256], strides = [1, 1]} : vector<8x512xf32> to vector<8x256xf32>
    %14 = arith.negf %13 : vector<8x256xf32>
    %15 = math.exp %14 : vector<8x256xf32>
    %cst_10 = arith.constant 1.000000e+00 : f32
    %16 = vector.broadcast %cst_10 : f32 to vector<8x256xf32>
    %17 = arith.addf %16, %15 : vector<8x256xf32>
    %18 = arith.divf %16, %17 : vector<8x256xf32>
    %19 = vector.extract_strided_slice %18 {offsets = [0, 0], sizes = [8, 128], strides = [1, 1]} : vector<8x256xf32> to vector<8x128xf32>
    %20 = vector.extract_strided_slice %18 {offsets = [0, 128], sizes = [8, 128], strides = [1, 1]} : vector<8x256xf32> to vector<8x128xf32>
    %21 = vector.extract_strided_slice %12 {offsets = [0, 256], sizes = [8, 128], strides = [1, 1]} : vector<8x512xf32> to vector<8x128xf32>
    %22 = math.tanh %21 : vector<8x128xf32>
    %23 = vector.extract_strided_slice %12 {offsets = [0, 384], sizes = [8, 128], strides = [1, 1]} : vector<8x512xf32> to vector<8x128xf32>
    %24 = arith.negf %23 : vector<8x128xf32>
    %25 = math.exp %24 : vector<8x128xf32>
    %cst_11 = arith.constant 1.000000e+00 : f32
    %26 = vector.broadcast %cst_11 : f32 to vector<8x128xf32>
    %27 = arith.addf %26, %25 : vector<8x128xf32>
    %28 = arith.divf %26, %27 : vector<8x128xf32>
    %29 = arith.mulf %20, %8 : vector<8x128xf32>
    %30 = arith.mulf %19, %22 : vector<8x128xf32>
    %31 = arith.addf %29, %30 : vector<8x128xf32>
    %32 = math.tanh %31 : vector<8x128xf32>
    %33 = arith.mulf %28, %32 : vector<8x128xf32>
    %c0_12 = arith.constant 0 : index
    %c0_13 = arith.constant 0 : index
    %34 = vector.load %arg8[%c0_12, %c0_13] : memref<64x128xf32, #tpu.memory_space<vmem>>, vector<8x128xf32>
    tpu.vector_store %arg8[%c0_12, %c0_13], %33 {strides = array<i32>} : memref<64x128xf32, #tpu.memory_space<vmem>>, vector<8x128xf32>,
    %35 = vector.extract_strided_slice %5 {offsets = [8, 0], sizes = [8, 512], strides = [1, 1]} : vector<64x512xf32> to vector<8x512xf32>
    %36 = arith.truncf %33 : vector<8x128xf32> to vector<8x128xbf16>
    %cst_14 = arith.constant dense<0.000000e+00> : vector<8x512xf32>
    %37 = tpu.matmul %36, %6, %cst_14 {dimension_numbers = #tpu.dot_dimension_numbers<[1], [0], [0], [1], [0, 0, 1, 1], [], []>} : vector<8x128xbf16>, vector<128x512xbf16>, vector<8x512xf32> -> vector<8x512xf32>
    %38 = arith.addf %35, %37 : vector<8x512xf32>
    %39 = vector.extract_strided_slice %38 {offsets = [0, 0], sizes = [8, 256], strides = [1, 1]} : vector<8x512xf32> to vector<8x256xf32>
    %40 = arith.negf %39 : vector<8x256xf32>
    %41 = math.exp %40 : vector<8x256xf32>
    %cst_15 = arith.constant 1.000000e+00 : f32
    %42 = vector.broadcast %cst_15 : f32 to vector<8x256xf32>
    %43 = arith.addf %42, %41 : vector<8x256xf32>
    %44 = arith.divf %42, %43 : vector<8x256xf32>
    %45 = vector.extract_strided_slice %44 {offsets = [0, 0], sizes = [8, 128], strides = [1, 1]} : vector<8x256xf32> to vector<8x128xf32>
    %46 = vector.extract_strided_slice %44 {offsets = [0, 128], sizes = [8, 128], strides = [1, 1]} : vector<8x256xf32> to vector<8x128xf32>
    %47 = vector.extract_strided_slice %38 {offsets = [0, 256], sizes = [8, 128], strides = [1, 1]} : vector<8x512xf32> to vector<8x128xf32>
    %48 = math.tanh %47 : vector<8x128xf32>
    %49 = vector.extract_strided_slice %38 {offsets = [0, 384], sizes = [8, 128], strides = [1, 1]} : vector<8x512xf32> to vector<8x128xf32>
    %50 = arith.negf %49 : vector<8x128xf32>
    %51 = math.exp %50 : vector<8x128xf32>
    %cst_16 = arith.constant 1.000000e+00 : f32
    %52 = vector.broadcast %cst_16 : f32 to vector<8x128xf32>
    %53 = arith.addf %52, %51 : vector<8x128xf32>
    %54 = arith.divf %52, %53 : vector<8x128xf32>
    %55 = arith.mulf %46, %31 : vector<8x128xf32>
    %56 = arith.mulf %45, %48 : vector<8x128xf32>
    %57 = arith.addf %55, %56 : vector<8x128xf32>
    %58 = math.tanh %57 : vector<8x128xf32>
    %59 = arith.mulf %54, %58 : vector<8x128xf32>
    %c8 = arith.constant 8 : index
    %c0_17 = arith.constant 0 : index
    %60 = vector.load %arg8[%c8, %c0_17] : memref<64x128xf32, #tpu.memory_space<vmem>>, vector<8x128xf32>
    tpu.vector_store %arg8[%c8, %c0_17], %59 {strides = array<i32>} : memref<64x128xf32, #tpu.memory_space<vmem>>, vector<8x128xf32>,
    %61 = vector.extract_strided_slice %5 {offsets = [16, 0], sizes = [8, 512], strides = [1, 1]} : vector<64x512xf32> to vector<8x512xf32>
    %62 = arith.truncf %59 : vector<8x128xf32> to vector<8x128xbf16>
    %cst_18 = arith.constant dense<0.000000e+00> : vector<8x512xf32>
    %63 = tpu.matmul %62, %6, %cst_18 {dimension_numbers = #tpu.dot_dimension_numbers<[1], [0], [0], [1], [0, 0, 1, 1], [], []>} : vector<8x128xbf16>, vector<128x512xbf16>, vector<8x512xf32> -> vector<8x512xf32>
    %64 = arith.addf %61, %63 : vector<8x512xf32>
    %65 = vector.extract_strided_slice %64 {offsets = [0, 0], sizes = [8, 256], strides = [1, 1]} : vector<8x512xf32> to vector<8x256xf32>
    %66 = arith.negf %65 : vector<8x256xf32>
    %67 = math.exp %66 : vector<8x256xf32>
    %cst_19 = arith.constant 1.000000e+00 : f32
    %68 = vector.broadcast %cst_19 : f32 to vector<8x256xf32>
    %69 = arith.addf %68, %67 : vector<8x256xf32>
    %70 = arith.divf %68, %69 : vector<8x256xf32>
    %71 = vector.extract_strided_slice %70 {offsets = [0, 0], sizes = [8, 128], strides = [1, 1]} : vector<8x256xf32> to vector<8x128xf32>
    %72 = vector.extract_strided_slice %70 {offsets = [0, 128], sizes = [8, 128], strides = [1, 1]} : vector<8x256xf32> to vector<8x128xf32>
    %73 = vector.extract_strided_slice %64 {offsets = [0, 256], sizes = [8, 128], strides = [1, 1]} : vector<8x512xf32> to vector<8x128xf32>
    %74 = math.tanh %73 : vector<8x128xf32>
    %75 = vector.extract_strided_slice %64 {offsets = [0, 384], sizes = [8, 128], strides = [1, 1]} : vector<8x512xf32> to vector<8x128xf32>
    %76 = arith.negf %75 : vector<8x128xf32>
    %77 = math.exp %76 : vector<8x128xf32>
    %cst_20 = arith.constant 1.000000e+00 : f32
    %78 = vector.broadcast %cst_20 : f32 to vector<8x128xf32>
    %79 = arith.addf %78, %77 : vector<8x128xf32>
    %80 = arith.divf %78, %79 : vector<8x128xf32>
    %81 = arith.mulf %72, %57 : vector<8x128xf32>
    %82 = arith.mulf %71, %74 : vector<8x128xf32>
    %83 = arith.addf %81, %82 : vector<8x128xf32>
    %84 = math.tanh %83 : vector<8x128xf32>
    %85 = arith.mulf %80, %84 : vector<8x128xf32>
    %c16 = arith.constant 16 : index
    %c0_21 = arith.constant 0 : index
    %86 = vector.load %arg8[%c16, %c0_21] : memref<64x128xf32, #tpu.memory_space<vmem>>, vector<8x128xf32>
    tpu.vector_store %arg8[%c16, %c0_21], %85 {strides = array<i32>} : memref<64x128xf32, #tpu.memory_space<vmem>>, vector<8x128xf32>,
    %87 = vector.extract_strided_slice %5 {offsets = [24, 0], sizes = [8, 512], strides = [1, 1]} : vector<64x512xf32> to vector<8x512xf32>
    %88 = arith.truncf %85 : vector<8x128xf32> to vector<8x128xbf16>
    %cst_22 = arith.constant dense<0.000000e+00> : vector<8x512xf32>
    %89 = tpu.matmul %88, %6, %cst_22 {dimension_numbers = #tpu.dot_dimension_numbers<[1], [0], [0], [1], [0, 0, 1, 1], [], []>} : vector<8x128xbf16>, vector<128x512xbf16>, vector<8x512xf32> -> vector<8x512xf32>
    %90 = arith.addf %87, %89 : vector<8x512xf32>
    %91 = vector.extract_strided_slice %90 {offsets = [0, 0], sizes = [8, 256], strides = [1, 1]} : vector<8x512xf32> to vector<8x256xf32>
    %92 = arith.negf %91 : vector<8x256xf32>
    %93 = math.exp %92 : vector<8x256xf32>
    %cst_23 = arith.constant 1.000000e+00 : f32
    %94 = vector.broadcast %cst_23 : f32 to vector<8x256xf32>
    %95 = arith.addf %94, %93 : vector<8x256xf32>
    %96 = arith.divf %94, %95 : vector<8x256xf32>
    %97 = vector.extract_strided_slice %96 {offsets = [0, 0], sizes = [8, 128], strides = [1, 1]} : vector<8x256xf32> to vector<8x128xf32>
    %98 = vector.extract_strided_slice %96 {offsets = [0, 128], sizes = [8, 128], strides = [1, 1]} : vector<8x256xf32> to vector<8x128xf32>
    %99 = vector.extract_strided_slice %90 {offsets = [0, 256], sizes = [8, 128], strides = [1, 1]} : vector<8x512xf32> to vector<8x128xf32>
    %100 = math.tanh %99 : vector<8x128xf32>
    %101 = vector.extract_strided_slice %90 {offsets = [0, 384], sizes = [8, 128], strides = [1, 1]} : vector<8x512xf32> to vector<8x128xf32>
    %102 = arith.negf %101 : vector<8x128xf32>
    %103 = math.exp %102 : vector<8x128xf32>
    %cst_24 = arith.constant 1.000000e+00 : f32
    %104 = vector.broadcast %cst_24 : f32 to vector<8x128xf32>
    %105 = arith.addf %104, %103 : vector<8x128xf32>
    %106 = arith.divf %104, %105 : vector<8x128xf32>
    %107 = arith.mulf %98, %83 : vector<8x128xf32>
    %108 = arith.mulf %97, %100 : vector<8x128xf32>
    %109 = arith.addf %107, %108 : vector<8x128xf32>
    %110 = math.tanh %109 : vector<8x128xf32>
    %111 = arith.mulf %106, %110 : vector<8x128xf32>
    %c24 = arith.constant 24 : index
    %c0_25 = arith.constant 0 : index
    %112 = vector.load %arg8[%c24, %c0_25] : memref<64x128xf32, #tpu.memory_space<vmem>>, vector<8x128xf32>
    tpu.vector_store %arg8[%c24, %c0_25], %111 {strides = array<i32>} : memref<64x128xf32, #tpu.memory_space<vmem>>, vector<8x128xf32>,
    %113 = vector.extract_strided_slice %5 {offsets = [32, 0], sizes = [8, 512], strides = [1, 1]} : vector<64x512xf32> to vector<8x512xf32>
    %114 = arith.truncf %111 : vector<8x128xf32> to vector<8x128xbf16>
    %cst_26 = arith.constant dense<0.000000e+00> : vector<8x512xf32>
    %115 = tpu.matmul %114, %6, %cst_26 {dimension_numbers = #tpu.dot_dimension_numbers<[1], [0], [0], [1], [0, 0, 1, 1], [], []>} : vector<8x128xbf16>, vector<128x512xbf16>, vector<8x512xf32> -> vector<8x512xf32>
    %116 = arith.addf %113, %115 : vector<8x512xf32>
    %117 = vector.extract_strided_slice %116 {offsets = [0, 0], sizes = [8, 256], strides = [1, 1]} : vector<8x512xf32> to vector<8x256xf32>
    %118 = arith.negf %117 : vector<8x256xf32>
    %119 = math.exp %118 : vector<8x256xf32>
    %cst_27 = arith.constant 1.000000e+00 : f32
    %120 = vector.broadcast %cst_27 : f32 to vector<8x256xf32>
    %121 = arith.addf %120, %119 : vector<8x256xf32>
    %122 = arith.divf %120, %121 : vector<8x256xf32>
    %123 = vector.extract_strided_slice %122 {offsets = [0, 0], sizes = [8, 128], strides = [1, 1]} : vector<8x256xf32> to vector<8x128xf32>
    %124 = vector.extract_strided_slice %122 {offsets = [0, 128], sizes = [8, 128], strides = [1, 1]} : vector<8x256xf32> to vector<8x128xf32>
    %125 = vector.extract_strided_slice %116 {offsets = [0, 256], sizes = [8, 128], strides = [1, 1]} : vector<8x512xf32> to vector<8x128xf32>
    %126 = math.tanh %125 : vector<8x128xf32>
    %127 = vector.extract_strided_slice %116 {offsets = [0, 384], sizes = [8, 128], strides = [1, 1]} : vector<8x512xf32> to vector<8x128xf32>
    %128 = arith.negf %127 : vector<8x128xf32>
    %129 = math.exp %128 : vector<8x128xf32>
    %cst_28 = arith.constant 1.000000e+00 : f32
    %130 = vector.broadcast %cst_28 : f32 to vector<8x128xf32>
    %131 = arith.addf %130, %129 : vector<8x128xf32>
    %132 = arith.divf %130, %131 : vector<8x128xf32>
    %133 = arith.mulf %124, %109 : vector<8x128xf32>
    %134 = arith.mulf %123, %126 : vector<8x128xf32>
    %135 = arith.addf %133, %134 : vector<8x128xf32>
    %136 = math.tanh %135 : vector<8x128xf32>
    %137 = arith.mulf %132, %136 : vector<8x128xf32>
    %c32 = arith.constant 32 : index
    %c0_29 = arith.constant 0 : index
    %138 = vector.load %arg8[%c32, %c0_29] : memref<64x128xf32, #tpu.memory_space<vmem>>, vector<8x128xf32>
    tpu.vector_store %arg8[%c32, %c0_29], %137 {strides = array<i32>} : memref<64x128xf32, #tpu.memory_space<vmem>>, vector<8x128xf32>,
    %139 = vector.extract_strided_slice %5 {offsets = [40, 0], sizes = [8, 512], strides = [1, 1]} : vector<64x512xf32> to vector<8x512xf32>
    %140 = arith.truncf %137 : vector<8x128xf32> to vector<8x128xbf16>
    %cst_30 = arith.constant dense<0.000000e+00> : vector<8x512xf32>
    %141 = tpu.matmul %140, %6, %cst_30 {dimension_numbers = #tpu.dot_dimension_numbers<[1], [0], [0], [1], [0, 0, 1, 1], [], []>} : vector<8x128xbf16>, vector<128x512xbf16>, vector<8x512xf32> -> vector<8x512xf32>
    %142 = arith.addf %139, %141 : vector<8x512xf32>
    %143 = vector.extract_strided_slice %142 {offsets = [0, 0], sizes = [8, 256], strides = [1, 1]} : vector<8x512xf32> to vector<8x256xf32>
    %144 = arith.negf %143 : vector<8x256xf32>
    %145 = math.exp %144 : vector<8x256xf32>
    %cst_31 = arith.constant 1.000000e+00 : f32
    %146 = vector.broadcast %cst_31 : f32 to vector<8x256xf32>
    %147 = arith.addf %146, %145 : vector<8x256xf32>
    %148 = arith.divf %146, %147 : vector<8x256xf32>
    %149 = vector.extract_strided_slice %148 {offsets = [0, 0], sizes = [8, 128], strides = [1, 1]} : vector<8x256xf32> to vector<8x128xf32>
    %150 = vector.extract_strided_slice %148 {offsets = [0, 128], sizes = [8, 128], strides = [1, 1]} : vector<8x256xf32> to vector<8x128xf32>
    %151 = vector.extract_strided_slice %142 {offsets = [0, 256], sizes = [8, 128], strides = [1, 1]} : vector<8x512xf32> to vector<8x128xf32>
    %152 = math.tanh %151 : vector<8x128xf32>
    %153 = vector.extract_strided_slice %142 {offsets = [0, 384], sizes = [8, 128], strides = [1, 1]} : vector<8x512xf32> to vector<8x128xf32>
    %154 = arith.negf %153 : vector<8x128xf32>
    %155 = math.exp %154 : vector<8x128xf32>
    %cst_32 = arith.constant 1.000000e+00 : f32
    %156 = vector.broadcast %cst_32 : f32 to vector<8x128xf32>
    %157 = arith.addf %156, %155 : vector<8x128xf32>
    %158 = arith.divf %156, %157 : vector<8x128xf32>
    %159 = arith.mulf %150, %135 : vector<8x128xf32>
    %160 = arith.mulf %149, %152 : vector<8x128xf32>
    %161 = arith.addf %159, %160 : vector<8x128xf32>
    %162 = math.tanh %161 : vector<8x128xf32>
    %163 = arith.mulf %158, %162 : vector<8x128xf32>
    %c40 = arith.constant 40 : index
    %c0_33 = arith.constant 0 : index
    %164 = vector.load %arg8[%c40, %c0_33] : memref<64x128xf32, #tpu.memory_space<vmem>>, vector<8x128xf32>
    tpu.vector_store %arg8[%c40, %c0_33], %163 {strides = array<i32>} : memref<64x128xf32, #tpu.memory_space<vmem>>, vector<8x128xf32>,
    %165 = vector.extract_strided_slice %5 {offsets = [48, 0], sizes = [8, 512], strides = [1, 1]} : vector<64x512xf32> to vector<8x512xf32>
    %166 = arith.truncf %163 : vector<8x128xf32> to vector<8x128xbf16>
    %cst_34 = arith.constant dense<0.000000e+00> : vector<8x512xf32>
    %167 = tpu.matmul %166, %6, %cst_34 {dimension_numbers = #tpu.dot_dimension_numbers<[1], [0], [0], [1], [0, 0, 1, 1], [], []>} : vector<8x128xbf16>, vector<128x512xbf16>, vector<8x512xf32> -> vector<8x512xf32>
    %168 = arith.addf %165, %167 : vector<8x512xf32>
    %169 = vector.extract_strided_slice %168 {offsets = [0, 0], sizes = [8, 256], strides = [1, 1]} : vector<8x512xf32> to vector<8x256xf32>
    %170 = arith.negf %169 : vector<8x256xf32>
    %171 = math.exp %170 : vector<8x256xf32>
    %cst_35 = arith.constant 1.000000e+00 : f32
    %172 = vector.broadcast %cst_35 : f32 to vector<8x256xf32>
    %173 = arith.addf %172, %171 : vector<8x256xf32>
    %174 = arith.divf %172, %173 : vector<8x256xf32>
    %175 = vector.extract_strided_slice %174 {offsets = [0, 0], sizes = [8, 128], strides = [1, 1]} : vector<8x256xf32> to vector<8x128xf32>
    %176 = vector.extract_strided_slice %174 {offsets = [0, 128], sizes = [8, 128], strides = [1, 1]} : vector<8x256xf32> to vector<8x128xf32>
    %177 = vector.extract_strided_slice %168 {offsets = [0, 256], sizes = [8, 128], strides = [1, 1]} : vector<8x512xf32> to vector<8x128xf32>
    %178 = math.tanh %177 : vector<8x128xf32>
    %179 = vector.extract_strided_slice %168 {offsets = [0, 384], sizes = [8, 128], strides = [1, 1]} : vector<8x512xf32> to vector<8x128xf32>
    %180 = arith.negf %179 : vector<8x128xf32>
    %181 = math.exp %180 : vector<8x128xf32>
    %cst_36 = arith.constant 1.000000e+00 : f32
    %182 = vector.broadcast %cst_36 : f32 to vector<8x128xf32>
    %183 = arith.addf %182, %181 : vector<8x128xf32>
    %184 = arith.divf %182, %183 : vector<8x128xf32>
    %185 = arith.mulf %176, %161 : vector<8x128xf32>
    %186 = arith.mulf %175, %178 : vector<8x128xf32>
    %187 = arith.addf %185, %186 : vector<8x128xf32>
    %188 = math.tanh %187 : vector<8x128xf32>
    %189 = arith.mulf %184, %188 : vector<8x128xf32>
    %c48 = arith.constant 48 : index
    %c0_37 = arith.constant 0 : index
    %190 = vector.load %arg8[%c48, %c0_37] : memref<64x128xf32, #tpu.memory_space<vmem>>, vector<8x128xf32>
    tpu.vector_store %arg8[%c48, %c0_37], %189 {strides = array<i32>} : memref<64x128xf32, #tpu.memory_space<vmem>>, vector<8x128xf32>,
    %191 = vector.extract_strided_slice %5 {offsets = [56, 0], sizes = [8, 512], strides = [1, 1]} : vector<64x512xf32> to vector<8x512xf32>
    %192 = arith.truncf %189 : vector<8x128xf32> to vector<8x128xbf16>
    %cst_38 = arith.constant dense<0.000000e+00> : vector<8x512xf32>
    %193 = tpu.matmul %192, %6, %cst_38 {dimension_numbers = #tpu.dot_dimension_numbers<[1], [0], [0], [1], [0, 0, 1, 1], [], []>} : vector<8x128xbf16>, vector<128x512xbf16>, vector<8x512xf32> -> vector<8x512xf32>
    %194 = arith.addf %191, %193 : vector<8x512xf32>
    %195 = vector.extract_strided_slice %194 {offsets = [0, 0], sizes = [8, 256], strides = [1, 1]} : vector<8x512xf32> to vector<8x256xf32>
    %196 = arith.negf %195 : vector<8x256xf32>
    %197 = math.exp %196 : vector<8x256xf32>
    %cst_39 = arith.constant 1.000000e+00 : f32
    %198 = vector.broadcast %cst_39 : f32 to vector<8x256xf32>
    %199 = arith.addf %198, %197 : vector<8x256xf32>
    %200 = arith.divf %198, %199 : vector<8x256xf32>
    %201 = vector.extract_strided_slice %200 {offsets = [0, 0], sizes = [8, 128], strides = [1, 1]} : vector<8x256xf32> to vector<8x128xf32>
    %202 = vector.extract_strided_slice %200 {offsets = [0, 128], sizes = [8, 128], strides = [1, 1]} : vector<8x256xf32> to vector<8x128xf32>
    %203 = vector.extract_strided_slice %194 {offsets = [0, 256], sizes = [8, 128], strides = [1, 1]} : vector<8x512xf32> to vector<8x128xf32>
    %204 = math.tanh %203 : vector<8x128xf32>
    %205 = vector.extract_strided_slice %194 {offsets = [0, 384], sizes = [8, 128], strides = [1, 1]} : vector<8x512xf32> to vector<8x128xf32>
    %206 = arith.negf %205 : vector<8x128xf32>
    %207 = math.exp %206 : vector<8x128xf32>
    %cst_40 = arith.constant 1.000000e+00 : f32
    %208 = vector.broadcast %cst_40 : f32 to vector<8x128xf32>
    %209 = arith.addf %208, %207 : vector<8x128xf32>
    %210 = arith.divf %208, %209 : vector<8x128xf32>
    %211 = arith.mulf %202, %187 : vector<8x128xf32>
    %212 = arith.mulf %201, %204 : vector<8x128xf32>
    %213 = arith.addf %211, %212 : vector<8x128xf32>
    %214 = math.tanh %213 : vector<8x128xf32>
    %215 = arith.mulf %210, %214 : vector<8x128xf32>
    %c56 = arith.constant 56 : index
    %c0_41 = arith.constant 0 : index
    %216 = vector.load %arg8[%c56, %c0_41] : memref<64x128xf32, #tpu.memory_space<vmem>>, vector<8x128xf32>
    tpu.vector_store %arg8[%c56, %c0_41], %215 {strides = array<i32>} : memref<64x128xf32, #tpu.memory_space<vmem>>, vector<8x128xf32>,
    %c0_42 = arith.constant 0 : index
    %c0_43 = arith.constant 0 : index
    %217 = vector.load %arg8[%c0_42, %c0_43] : memref<64x128xf32, #tpu.memory_space<vmem>>, vector<64x128xf32>
    %218 = arith.truncf %217 : vector<64x128xf32> to vector<64x128xbf16>
    %c0_44 = arith.constant 0 : index
    %c0_45 = arith.constant 0 : index
    %219 = vector.load %arg5[%c0_44, %c0_45] : memref<128x128xbf16, #tpu.memory_space<vmem>>, vector<128x128xbf16>
    %cst_46 = arith.constant dense<0.000000e+00> : vector<64x128xf32>
    %220 = tpu.matmul %218, %219, %cst_46 {dimension_numbers = #tpu.dot_dimension_numbers<[1], [0], [0], [1], [0, 0, 1, 1], [], []>} : vector<64x128xbf16>, vector<128x128xbf16>, vector<64x128xf32> -> vector<64x128xf32>
    %c0_47 = arith.constant 0 : index
    %c0_48 = arith.constant 0 : index
    %221 = vector.load %arg6[%c0_47, %c0_48] : memref<1x128xf32, #tpu.memory_space<vmem>>, vector<1x128xf32>
    %222 = vector.broadcast %221 : vector<1x128xf32> to vector<64x128xf32>
    %223 = arith.addf %220, %222 : vector<64x128xf32>
    %cst_49 = arith.constant dense<0xFF800000> : vector<64xf32>
    %224 = vector.multi_reduction <maximumf>, %223, %cst_49 [1] : vector<64x128xf32> to vector<64xf32>
    %225 = vector.shape_cast %224 : vector<64xf32> to vector<64x1xf32>
    %226 = vector.broadcast %225 : vector<64x1xf32> to vector<64x128xf32>
    %227 = arith.subf %223, %226 : vector<64x128xf32>
    %228 = math.exp %227 : vector<64x128xf32>
    %cst_50 = arith.constant dense<0.000000e+00> : vector<64xf32>
    %229 = vector.multi_reduction <add>, %228, %cst_50 [1] : vector<64x128xf32> to vector<64xf32>
    %230 = vector.shape_cast %229 : vector<64xf32> to vector<64x1xf32>
    %231 = math.log %230 : vector<64x1xf32>
    %232 = arith.addf %225, %231 : vector<64x1xf32>
    %233 = vector.broadcast %232 : vector<64x1xf32> to vector<64x128xf32>
    %234 = arith.subf %223, %233 : vector<64x128xf32>
    %c0_51 = arith.constant 0 : index
    %c0_52 = arith.constant 0 : index
    %235 = vector.load %arg7[%c0_51, %c0_52] : memref<64x128xf32, #tpu.memory_space<vmem>>, vector<64x128xf32>
    tpu.vector_store %arg7[%c0_51, %c0_52], %234 {strides = array<i32>} : memref<64x128xf32, #tpu.memory_space<vmem>>, vector<64x128xf32>,
    return
  }
  func.func @transform_0(%arg0: i32) -> (i32, i32) {
    %c0_i32 = arith.constant 0 : i32
    %c0_i32_0 = arith.constant 0 : i32
    return %arg0, %c0_i32 : i32, i32
  }
  func.func @transform_1(%arg0: i32) -> (i32, i32) {
    %c0_i32 = arith.constant 0 : i32
    %c0_i32_0 = arith.constant 0 : i32
    %c0_i32_1 = arith.constant 0 : i32
    return %c0_i32, %c0_i32_0 : i32, i32
  }
  func.func @transform_2(%arg0: i32) -> (i32, i32) {
    %c0_i32 = arith.constant 0 : i32
    %c0_i32_0 = arith.constant 0 : i32
    %c0_i32_1 = arith.constant 0 : i32
    return %c0_i32, %c0_i32_0 : i32, i32
  }
  func.func @transform_3(%arg0: i32) -> (i32, i32) {
    %c0_i32 = arith.constant 0 : i32
    %c0_i32_0 = arith.constant 0 : i32
    %c0_i32_1 = arith.constant 0 : i32
    return %c0_i32, %c0_i32_0 : i32, i32
  }
  func.func @transform_4(%arg0: i32) -> (i32, i32) {
    %c0_i32 = arith.constant 0 : i32
    %c0_i32_0 = arith.constant 0 : i32
    %c0_i32_1 = arith.constant 0 : i32
    return %c0_i32, %c0_i32_0 : i32, i32
  }
  func.func @transform_5(%arg0: i32) -> (i32, i32) {
    %c0_i32 = arith.constant 0 : i32
    %c0_i32_0 = arith.constant 0 : i32
    %c0_i32_1 = arith.constant 0 : i32
    return %c0_i32, %c0_i32_0 : i32, i32
  }
  func.func @transform_6(%arg0: i32) -> (i32, i32) {
    %c0_i32 = arith.constant 0 : i32
    %c0_i32_0 = arith.constant 0 : i32
    return %arg0, %c0_i32 : i32, i32
  }
}

</mosaic_0001>

<llo_original>
// kernel: lstm_tagger_forward.1
$region0: #{lstm_tagger_forward.1}
  #allocation0 [shape = 'u32[]', space=smem, size = 0x4, offset = 0x4, fixed_abs, tag = 'smem constant byte address 0x4 - core index']
  #allocation1 [shape = 'u32[144,128]{1,0:T(1,128)}', space=vmem, size = 0x12000, scoped, tag = 'internal scratch']
  #allocation2 [shape = 'f32[64,128]{1,0:T(8,128)}', space=vmem, size = 0x8000, scoped, tag = 'scratch operand']
  %s0 = inlined_call_operand.vmem [shape: bf16[128,128], index: 0, kind: input, shape index: {}]
  %s1 = inlined_call_operand.vmem [shape: bf16[128,512], index: 1, kind: input, shape index: {}]
  %s2 = inlined_call_operand.vmem [shape: bf16[128,512], index: 2, kind: input, shape index: {}]
  %s3 = inlined_call_operand.vmem [shape: f32[1,512], index: 3, kind: input, shape index: {}]
  %s4 = inlined_call_operand.vmem [shape: bf16[128,128], index: 4, kind: input, shape index: {}]
  %s5 = inlined_call_operand.vmem [shape: f32[1,128], index: 5, kind: input, shape index: {}]
  %s6 = inlined_call_operand.vmem [shape: f32[128,128], index: 6, kind: output, shape index: {}]
  %s7 = sld [smem:[#allocation0]]
  $region57: #{lstm_tagger_forward.1} parent=0
    _
  %s9 = ssub.s32 1, %s7
  %s10 = scalar_select 0, %s9, %s7
  loop: start=0, step=1, limit=4
  $region2: #{lstm_tagger_forward.1} parent=0 // loop_pre_header
    _
  $region3: #{lstm_tagger_forward.1} parent=0 // loop_header
    %s12 = sphi 0, %s16
    %p13 = scmp.ge.s32.totalorder %s12, 4
    %s22 = sphi 0, %s24
    %s25 = sphi 0, %s22
    %s26 = sphi 0, %s25
    %s42 = sphi 0, %s26
    %s46 = sphi 0, %s46
    %s48 = sphi 0, %s46
    %s49 = sphi 0, %s48
    %s63 = sphi 0, %s49
    %s67 = sphi 0, %s67
    %s69 = sphi 0, %s67
    %s70 = sphi 0, %s69
    %s84 = sphi 0, %s70
    %s88 = sphi 0, %s88
    %s90 = sphi 0, %s88
    %s91 = sphi 0, %s90
    %s105 = sphi 0, %s91
    %s109 = sphi 0, %s109
    %s111 = sphi 0, %s109
    %s112 = sphi 0, %s111
    %s126 = sphi 0, %s112
    %s130 = sphi 0, %s130
    %s132 = sphi 0, %s130
    %s133 = sphi 0, %s132
    %s147 = sphi 0, %s133
    %s153 = sphi 0, %s155
    %s156 = sphi 0, %s153
    %s157 = sphi 0, %s156
    %s173 = sphi 0, %s157
  $region4: #{lstm_tagger_forward.1} parent=0 // loop_header_branch
    %15 = sbr.rel (%p13) target = $region8
  $region5: #{lstm_tagger_forward.1} parent=0 // loop_body
    %s17 = ssub.s32 %s12, 1
    %s18 = ssub.s32 %s12, 2
    %s19 = sadd.s32 %s12, 1
    %s20 = ssub.s32 %s12, %s19
    %p21 = scmp.eq.s32.totalorder %s20, 0
    %s23 = sadd.s32 %s22, 1
    %s24 = scalar_select %p21, %s22, %s23
    %p27 = pneg %p21
    %p28 = scmp.eq.s32.totalorder %s12, 1
    %p29 = por %p27, %p28
    %p30 = scmp.ne.s32.totalorder %s22, %s25
    %p31 = scmp.eq.s32.totalorder %s12, 0
    %p32 = por %p30, %p31
    %p33 = scmp.ne.s32.totalorder %s22, %s25
    %p34 = scmp.eq.s32.totalorder %s17, 1
    %p35 = por %p33, %p34
    %p36 = scmp.ne.s32.totalorder %s25, %s26
    %p37 = scmp.eq.s32.totalorder %s17, 0
    %p38 = por %p36, %p37
    %p39 = scmp.ne.s32.totalorder %s25, %s26
    %p40 = scmp.eq.s32.totalorder %s18, 1
    %p41 = por %p39, %p40
    %p43 = scmp.ne.s32.totalorder %s26, %s42
    %p44 = scmp.eq.s32.totalorder %s18, 0
    %p45 = por %p43, %p44
    %s47 = sadd.s32 %s46, 1
    %p50 = scmp.eq.s32.totalorder %s12, 1
    %p51 = scmp.ne.s32.totalorder %s46, %s48
    %p52 = scmp.eq.s32.totalorder %s12, 0
    %p53 = por %p51, %p52
    %p54 = scmp.ne.s32.totalorder %s46, %s48
    %p55 = scmp.eq.s32.totalorder %s17, 1
    %p56 = por %p54, %p55
    %p57 = scmp.ne.s32.totalorder %s48, %s49
    %p58 = scmp.eq.s32.totalorder %s17, 0
    %p59 = por %p57, %p58
    %p60 = scmp.ne.s32.totalorder %s48, %s49
    %p61 = scmp.eq.s32.totalorder %s18, 1
    %p62 = por %p60, %p61
    %p64 = scmp.ne.s32.totalorder %s49, %s63
    %p65 = scmp.eq.s32.totalorder %s18, 0
    %p66 = por %p64, %p65
    %s68 = sadd.s32 %s67, 1
    %p71 = scmp.eq.s32.totalorder %s12, 1
    %p72 = scmp.ne.s32.totalorder %s67, %s69
    %p73 = scmp.eq.s32.totalorder %s12, 0
    %p74 = por %p72, %p73
    %p75 = scmp.ne.s32.totalorder %s67, %s69
    %p76 = scmp.eq.s32.totalorder %s17, 1
    %p77 = por %p75, %p76
    %p78 = scmp.ne.s32.totalorder %s69, %s70
    %p79 = scmp.eq.s32.totalorder %s17, 0
    %p80 = por %p78, %p79
    %p81 = scmp.ne.s32.totalorder %s69, %s70
    %p82 = scmp.eq.s32.totalorder %s18, 1
    %p83 = por %p81, %p82
    %p85 = scmp.ne.s32.totalorder %s70, %s84
    %p86 = scmp.eq.s32.totalorder %s18, 0
    %p87 = por %p85, %p86
    %s89 = sadd.s32 %s88, 1
    %p92 = scmp.eq.s32.totalorder %s12, 1
    %p93 = scmp.ne.s32.totalorder %s88, %s90
    %p94 = scmp.eq.s32.totalorder %s12, 0
    %p95 = por %p93, %p94
    %p96 = scmp.ne.s32.totalorder %s88, %s90
    %p97 = scmp.eq.s32.totalorder %s17, 1
    %p98 = por %p96, %p97
    %p99 = scmp.ne.s32.totalorder %s90, %s91
    %p100 = scmp.eq.s32.totalorder %s17, 0
    %p101 = por %p99, %p100
    %p102 = scmp.ne.s32.totalorder %s90, %s91
    %p103 = scmp.eq.s32.totalorder %s18, 1
    %p104 = por %p102, %p103
    %p106 = scmp.ne.s32.totalorder %s91, %s105
    %p107 = scmp.eq.s32.totalorder %s18, 0
    %p108 = por %p106, %p107
    %s110 = sadd.s32 %s109, 1
    %p113 = scmp.eq.s32.totalorder %s12, 1
    %p114 = scmp.ne.s32.totalorder %s109, %s111
    %p115 = scmp.eq.s32.totalorder %s12, 0
    %p116 = por %p114, %p115
    %p117 = scmp.ne.s32.totalorder %s109, %s111
    %p118 = scmp.eq.s32.totalorder %s17, 1
    %p119 = por %p117, %p118
    %p120 = scmp.ne.s32.totalorder %s111, %s112
    %p121 = scmp.eq.s32.totalorder %s17, 0
    %p122 = por %p120, %p121
    %p123 = scmp.ne.s32.totalorder %s111, %s112
    %p124 = scmp.eq.s32.totalorder %s18, 1
    %p125 = por %p123, %p124
    %p127 = scmp.ne.s32.totalorder %s112, %s126
    %p128 = scmp.eq.s32.totalorder %s18, 0
    %p129 = por %p127, %p128
    %s131 = sadd.s32 %s130, 1
    %p134 = scmp.eq.s32.totalorder %s12, 1
    %p135 = scmp.ne.s32.totalorder %s130, %s132
    %p136 = scmp.eq.s32.totalorder %s12, 0
    %p137 = por %p135, %p136
    %p138 = scmp.ne.s32.totalorder %s130, %s132
    %p139 = scmp.eq.s32.totalorder %s17, 1
    %p140 = por %p138, %p139
    %p141 = scmp.ne.s32.totalorder %s132, %s133
    %p142 = scmp.eq.s32.totalorder %s17, 0
    %p143 = por %p141, %p142
    %p144 = scmp.ne.s32.totalorder %s132, %s133
    %p145 = scmp.eq.s32.totalorder %s18, 1
    %p146 = por %p144, %p145
    %p148 = scmp.ne.s32.totalorder %s133, %s147
    %p149 = scmp.eq.s32.totalorder %s18, 0
    %p150 = por %p148, %p149
    %s151 = ssub.s32 %s12, %s19
    %p152 = scmp.eq.s32.totalorder %s151, 0
    %s154 = sadd.s32 %s153, 1
    %s155 = scalar_select %p152, %s153, %s154
    %p158 = pneg %p152
    %p159 = scmp.eq.s32.totalorder %s12, 1
    %p160 = por %p158, %p159
    %p161 = scmp.ne.s32.totalorder %s153, %s156
    %p162 = scmp.eq.s32.totalorder %s12, 0
    %p163 = por %p161, %p162
    %p164 = scmp.ne.s32.totalorder %s153, %s156
    %p165 = scmp.eq.s32.totalorder %s17, 1
    %p166 = por %p164, %p165
    %p167 = scmp.ne.s32.totalorder %s156, %s157
    %p168 = scmp.eq.s32.totalorder %s17, 0
    %p169 = por %p167, %p168
    %p170 = scmp.ne.s32.totalorder %s156, %s157
    %p171 = scmp.eq.s32.totalorder %s18, 1
    %p172 = por %p170, %p171
    %p174 = scmp.ne.s32.totalorder %s157, %s173
    %p175 = scmp.eq.s32.totalorder %s18, 0
    %p176 = por %p174, %p175
    %p177 = scmp.le.s32.totalorder 1, %s12
    %p178 = scmp.lt.s32.totalorder %s12, 3
    %p179 = pnand %p177, %p178
    %p180 = pneg %p179
    // Predicated region
    $region9: #{lstm_tagger_forward.1} parent=5 // pred_check
      _
    $region10: #{lstm_tagger_forward.1} parent=5 // pred_check_branch
      %182 = sbr.rel (%p179) target = $region12
    $region11: #{lstm_tagger_forward.1} parent=5 // pred_region
      %s183 = ssub.s32 %s12, 1
      // Predicated region
      $region13: #{lstm_tagger_forward.1} parent=11 // pred_check
        %p184 = pneg %p59
      $region14: #{lstm_tagger_forward.1} parent=11 // pred_check_branch
        %186 = sbr.rel (%p184) target = $region16
      $region15: #{lstm_tagger_forward.1} parent=11 // pred_region
        _
      $region16: #{lstm_tagger_forward.1} parent=11 // pred_fallthru
        _
      // Predicated region
      $region17: #{lstm_tagger_forward.1} parent=11 // pred_check
        %p187 = pneg %p80
      $region18: #{lstm_tagger_forward.1} parent=11 // pred_check_branch
        %189 = sbr.rel (%p187) target = $region20
      $region19: #{lstm_tagger_forward.1} parent=11 // pred_region
        _
      $region20: #{lstm_tagger_forward.1} parent=11 // pred_fallthru
        _
      // Predicated region
      $region21: #{lstm_tagger_forward.1} parent=11 // pred_check
        %p190 = pneg %p101
      $region22: #{lstm_tagger_forward.1} parent=11 // pred_check_branch
        %192 = sbr.rel (%p190) target = $region24
      $region23: #{lstm_tagger_forward.1} parent=11 // pred_region
        _
      $region24: #{lstm_tagger_forward.1} parent=11 // pred_fallthru
        _
      // Predicated region
      $region25: #{lstm_tagger_forward.1} parent=11 // pred_check
        %p193 = pneg %p122
      $region26: #{lstm_tagger_forward.1} parent=11 // pred_check_branch
        %195 = sbr.rel (%p193) target = $region28
      $region27: #{lstm_tagger_forward.1} parent=11 // pred_region
        _
      $region28: #{lstm_tagger_forward.1} parent=11 // pred_fallthru
        _
      // Predicated region
      $region29: #{lstm_tagger_forward.1} parent=11 // pred_check
        %p196 = pneg %p143
      $region30: #{lstm_tagger_forward.1} parent=11 // pred_check_branch
        %198 = sbr.rel (%p196) target = $region32
      $region31: #{lstm_tagger_forward.1} parent=11 // pred_region
        _
      $region32: #{lstm_tagger_forward.1} parent=11 // pred_fallthru
        _
    $region12: #{lstm_tagger_forward.1} parent=5 // pred_fallthru
      _
    %p199 = scmp.lt.s32.totalorder %s12, 2
    // Predicated region
    $region33: #{lstm_tagger_forward.1} parent=5 // pred_check
      %p200 = pneg %p199
    $region34: #{lstm_tagger_forward.1} parent=5 // pred_check_branch
      %202 = sbr.rel (%p200) target = $region36
    $region35: #{lstm_tagger_forward.1} parent=5 // pred_region
      // Predicated region
      $region37: #{lstm_tagger_forward.1} parent=35 // pred_check
        %p203 = pneg %p32
      $region38: #{lstm_tagger_forward.1} parent=35 // pred_check_branch
        %205 = sbr.rel (%p203) target = $region40
      $region39: #{lstm_tagger_forward.1} parent=35 // pred_region
        %s206 = smul.u32 8, %s12
        %p207 = scmp.lt.s32.totalorder %s206, 15
        %s208 = scalar_select %p207, %s206, 15
        %s209 = smul.addr %s208, 4
        %s210 = scalar_lea.vmem %s0, %s209
        %s211 = smul.u32 8, %s12
      $region40: #{lstm_tagger_forward.1} parent=35 // pred_fallthru
        _
    $region36: #{lstm_tagger_forward.1} parent=5 // pred_fallthru
      _
    %p212 = scmp.le.s32.totalorder 1, %s12
    %p213 = scmp.lt.s32.totalorder %s12, 3
    %p214 = pnand %p212, %p213
    %p215 = pneg %p214
    // Predicated region
    $region41: #{lstm_tagger_forward.1} parent=5 // pred_check
      _
    $region42: #{lstm_tagger_forward.1} parent=5 // pred_check_branch
      %217 = sbr.rel (%p214) target = $region44
    $region43: #{lstm_tagger_forward.1} parent=5 // pred_region
      %s218 = ssub.s32 %s12, 1
      %s219 = smul.u32 8, %s17
      %p220 = scmp.lt.s32.totalorder %s219, 15
      %s221 = scalar_select %p220, %s219, 15
      %s222 = smul.addr %s221, 4
      %s223 = scalar_lea.vmem %s0, %s222
      %p224 = pneg %p38
      %p225 = pneg %p35
      %p226 = pneg %p59
      %p227 = pneg %p56
      %p228 = pneg %p80
      %p229 = pneg %p77
      %p230 = pneg %p101
      %p231 = pneg %p98
      %p232 = pneg %p122
      %p233 = pneg %p119
      %p234 = pneg %p143
      %p235 = pneg %p140
      %p236 = pneg %p169
      %p237 = pneg %p166
      %s238 = smul.u32 8, %s17
      %p239 = scmp.lt.s32.totalorder %s238, 15
      %s240 = scalar_select %p239, %s238, 15
      %s241 = smul.addr %s240, 8
      %s242 = scalar_lea.vmem %s6, %s241
      %s243 = smul.u32 8, %s17
      %p244 = scmp.lt.s32.totalorder %s243, 15
      %s245 = scalar_select %p244, %s243, 15
      %s246 = smul.addr %s245, 4
      %s247 = scalar_lea.vmem %s0, %s246
      %s248 = smul.u32 8, %s17
      %s249 = smul.u32 8, %s17
      %p250 = scmp.lt.s32.totalorder %s249, 15
      %s251 = scalar_select %p250, %s249, 15
      %s252 = smul.addr %s251, 8
      %s253 = scalar_lea.vmem %s6, %s252
      %s254 = smul.u32 8, %s17
      %v256 = vld [vmem:[%s247] sm:$0xf]
      %v257 = vld [vmem:[%s247 + $0x4] sm:$0xf]
      %v258 = vld [vmem:[%s247 + $0x8] sm:$0xf]
      %v259 = vld [vmem:[%s247 + $0xc] sm:$0xf]
      %v260 = vld [vmem:[%s247 + $0x10] sm:$0xf]
      %v261 = vld [vmem:[%s247 + $0x14] sm:$0xf]
      %v262 = vld [vmem:[%s247 + $0x18] sm:$0xf]
      %v263 = vld [vmem:[%s247 + $0x1c] sm:$0xf]
      %v264 = vld [vmem:[%s1] sm:$0xff]
      %v265 = vld [vmem:[%s1 + $0x8] sm:$0xff]
      %v266 = vld [vmem:[%s1 + $0x10] sm:$0xff]
      %v267 = vld [vmem:[%s1 + $0x18] sm:$0xff]
      %v268 = vld [vmem:[%s1 + $0x20] sm:$0xff]
      %v269 = vld [vmem:[%s1 + $0x28] sm:$0xff]
      %v270 = vld [vmem:[%s1 + $0x30] sm:$0xff]
      %v271 = vld [vmem:[%s1 + $0x38] sm:$0xff]
      %v272 = vld [vmem:[%s1 + $0x40] sm:$0xff]
      %v273 = vld [vmem:[%s1 + $0x48] sm:$0xff]
      %v274 = vld [vmem:[%s1 + $0x50] sm:$0xff]
      %v275 = vld [vmem:[%s1 + $0x58] sm:$0xff]
      %v276 = vld [vmem:[%s1 + $0x60] sm:$0xff]
      %v277 = vld [vmem:[%s1 + $0x68] sm:$0xff]
      %v278 = vld [vmem:[%s1 + $0x70] sm:$0xff]
      %v279 = vld [vmem:[%s1 + $0x78] sm:$0xff]
      %v280 = vld [vmem:[%s1 + $0x80] sm:$0xff]
      %v281 = vld [vmem:[%s1 + $0x88] sm:$0xff]
      %v282 = vld [vmem:[%s1 + $0x90] sm:$0xff]
      %v283 = vld [vmem:[%s1 + $0x98] sm:$0xff]
      %v284 = vld [vmem:[%s1 + $0xa0] sm:$0xff]
      %v285 = vld [vmem:[%s1 + $0xa8] sm:$0xff]
      %v286 = vld [vmem:[%s1 + $0xb0] sm:$0xff]
      %v287 = vld [vmem:[%s1 + $0xb8] sm:$0xff]
      %v288 = vld [vmem:[%s1 + $0xc0] sm:$0xff]
      %v289 = vld [vmem:[%s1 + $0xc8] sm:$0xff]
      %v290 = vld [vmem:[%s1 + $0xd0] sm:$0xff]
      %v291 = vld [vmem:[%s1 + $0xd8] sm:$0xff]
      %v292 = vld [vmem:[%s1 + $0xe0] sm:$0xff]
      %v293 = vld [vmem:[%s1 + $0xe8] sm:$0xff]
      %v294 = vld [vmem:[%s1 + $0xf0] sm:$0xff]
      %v295 = vld [vmem:[%s1 + $0xf8] sm:$0xff]
      %v296 = vld [vmem:[%s3] sm:$0xf]
      %v298 = vlaneseq
      %v299 = vshrl.u32 %v298, 7
      %v300 = vsub.s32 0, %v299
      %v301 = vrot.slane %v296, %v300
      %v302 = vlaneseq
      %v303 = vshrl.u32 %v302, 7
      %v304 = vsub.s32 1, %v303
      %v305 = vrot.slane %v296, %v304
      %v306 = vlaneseq
      %v307 = vshrl.u32 %v306, 7
      %v308 = vsub.s32 2, %v307
      %v309 = vrot.slane %v296, %v308
      %v310 = vlaneseq
      %v311 = vshrl.u32 %v310, 7
      %v312 = vsub.s32 3, %v311
      %v313 = vrot.slane %v296, %v312
      %v326 = vunpack.c.l.b16 %v256
      %v327 = vunpack.c.l.b16 %v257
      %v328 = vunpack.c.l.b16 %v258
      %v329 = vunpack.c.l.b16 %v259
      %v330 = vunpack.c.l.b16 %v260
      %v331 = vunpack.c.l.b16 %v261
      %v332 = vunpack.c.l.b16 %v262
      %v333 = vunpack.c.l.b16 %v263
      %v334 = vpack.c.b16 %v327, %v326
      %v335 = vpack.c.b16 %v329, %v328
      %v336 = vpack.c.b16 %v331, %v330
      %v337 = vpack.c.b16 %v333, %v332
      %v374 = vunpack.c.l.b16 %v264
      %v375 = vunpack.c.h.b16 %v264
      %v376 = vunpack.c.l.b16 %v265
      %v377 = vunpack.c.h.b16 %v265
      %v378 = vunpack.c.l.b16 %v266
      %v379 = vunpack.c.h.b16 %v266
      %v380 = vunpack.c.l.b16 %v267
      %v381 = vunpack.c.h.b16 %v267
      %v382 = vunpack.c.l.b16 %v268
      %v383 = vunpack.c.h.b16 %v268
      %v384 = vunpack.c.l.b16 %v269
      %v385 = vunpack.c.h.b16 %v269
      %v386 = vunpack.c.l.b16 %v270
      %v387 = vunpack.c.h.b16 %v270
      %v388 = vunpack.c.l.b16 %v271
      %v389 = vunpack.c.h.b16 %v271
      %v390 = vunpack.c.l.b16 %v272
      %v391 = vunpack.c.h.b16 %v272
      %v392 = vunpack.c.l.b16 %v273
      %v393 = vunpack.c.h.b16 %v273
      %v394 = vunpack.c.l.b16 %v274
      %v395 = vunpack.c.h.b16 %v274
      %v396 = vunpack.c.l.b16 %v275
      %v397 = vunpack.c.h.b16 %v275
      %v398 = vunpack.c.l.b16 %v276
      %v399 = vunpack.c.h.b16 %v276
      %v400 = vunpack.c.l.b16 %v277
      %v401 = vunpack.c.h.b16 %v277
      %v402 = vunpack.c.l.b16 %v278
      %v403 = vunpack.c.h.b16 %v278
      %v404 = vunpack.c.l.b16 %v279
      %v405 = vunpack.c.h.b16 %v279
      %v406 = vunpack.c.l.b16 %v280
      %v407 = vunpack.c.h.b16 %v280
      %v408 = vunpack.c.l.b16 %v281
      %v409 = vunpack.c.h.b16 %v281
      %v410 = vunpack.c.l.b16 %v282
      %v411 = vunpack.c.h.b16 %v282
      %v412 = vunpack.c.l.b16 %v283
      %v413 = vunpack.c.h.b16 %v283
      %v414 = vunpack.c.l.b16 %v284
      %v415 = vunpack.c.h.b16 %v284
      %v416 = vunpack.c.l.b16 %v285
      %v417 = vunpack.c.h.b16 %v285
      %v418 = vunpack.c.l.b16 %v286
      %v419 = vunpack.c.h.b16 %v286
      %v420 = vunpack.c.l.b16 %v287
      %v421 = vunpack.c.h.b16 %v287
      %v422 = vunpack.c.l.b16 %v288
      %v423 = vunpack.c.h.b16 %v288
      %v424 = vunpack.c.l.b16 %v289
      %v425 = vunpack.c.h.b16 %v289
      %v426 = vunpack.c.l.b16 %v290
      %v427 = vunpack.c.h.b16 %v290
      %v428 = vunpack.c.l.b16 %v291
      %v429 = vunpack.c.h.b16 %v291
      %v430 = vunpack.c.l.b16 %v292
      %v431 = vunpack.c.h.b16 %v292
      %v432 = vunpack.c.l.b16 %v293
      %v433 = vunpack.c.h.b16 %v293
      %v434 = vunpack.c.l.b16 %v294
      %v435 = vunpack.c.h.b16 %v294
      %v436 = vunpack.c.l.b16 %v295
      %v437 = vunpack.c.h.b16 %v295
      %v438 = vpack.c.b16 %v378, %v374
      %v439 = vpack.c.b16 %v379, %v375
      %v440 = vpack.c.b16 %v380, %v376
      %v441 = vpack.c.b16 %v381, %v377
      %v442 = vpack.c.b16 %v386, %v382
      %v443 = vpack.c.b16 %v387, %v383
      %v444 = vpack.c.b16 %v388, %v384
      %v445 = vpack.c.b16 %v389, %v385
      %v446 = vpack.c.b16 %v394, %v390
      %v447 = vpack.c.b16 %v395, %v391
      %v448 = vpack.c.b16 %v396, %v392
      %v449 = vpack.c.b16 %v397, %v393
      %v450 = vpack.c.b16 %v402, %v398
      %v451 = vpack.c.b16 %v403, %v399
      %v452 = vpack.c.b16 %v404, %v400
      %v453 = vpack.c.b16 %v405, %v401
      %v454 = vpack.c.b16 %v410, %v406
      %v455 = vpack.c.b16 %v411, %v407
      %v456 = vpack.c.b16 %v412, %v408
      %v457 = vpack.c.b16 %v413, %v409
      %v458 = vpack.c.b16 %v418, %v414
      %v459 = vpack.c.b16 %v419, %v415
      %v460 = vpack.c.b16 %v420, %v416
      %v461 = vpack.c.b16 %v421, %v417
      %v462 = vpack.c.b16 %v426, %v422
      %v463 = vpack.c.b16 %v427, %v423
      %v464 = vpack.c.b16 %v428, %v424
      %v465 = vpack.c.b16 %v429, %v425
      %v466 = vpack.c.b16 %v434, %v430
      %v467 = vpack.c.b16 %v435, %v431
      %v468 = vpack.c.b16 %v436, %v432
      %v469 = vpack.c.b16 %v437, %v433
      %502 = vmatprep.subr.bf16.mxu0 %v439
      %503 = vmatpush1.bf16.msra.mxu0 %v438
      %504 = vmatprep.subr.bf16.mxu0 %v443
      %505 = vmatpush1.bf16.msra.mxu0 %v442
      %506 = vmatprep.subr.bf16.mxu0 %v447
      %507 = vmatpush1.bf16.msra.mxu0 %v446
      %508 = vmatprep.subr.bf16.mxu0 %v451
      %509 = vmatpush1.bf16.msra.mxu0 %v450
      %510 = vmatprep.subr.bf16.mxu0 %v455
      %511 = vmatpush1.bf16.msra.mxu0 %v454
      %512 = vmatprep.subr.bf16.mxu0 %v459
      %513 = vmatpush1.bf16.msra.mxu0 %v458
      %514 = vmatprep.subr.bf16.mxu0 %v463
      %515 = vmatpush1.bf16.msra.mxu0 %v462
      %516 = vmatprep.subr.bf16.mxu0 %v467
      %517 = vmatpush1.bf16.msra.mxu0 %v466
      %518 = vmatprep.subr.bf16.mxu0 0
      %519 = vmatpush1.bf16.msra.mxu0 0
      %520 = vmatprep.subr.bf16.mxu0 0
      %521 = vmatpush1.bf16.msra.mxu0 0
      %522 = vmatprep.subr.bf16.mxu0 0
      %523 = vmatpush1.bf16.msra.mxu0 0
      %524 = vmatprep.subr.bf16.mxu0 0
      %525 = vmatpush1.bf16.msra.mxu0 0
      %526 = vmatprep.subr.bf16.mxu0 0
      %527 = vmatpush1.bf16.msra.mxu0 0
      %528 = vmatprep.subr.bf16.mxu0 0
      %529 = vmatpush1.bf16.msra.mxu0 0
      %530 = vmatprep.subr.bf16.mxu0 0
      %531 = vmatpush1.bf16.msra.mxu0 0
      %532 = vmatprep.subr.bf16.mxu0 0
      %533 = vmatpush1.bf16.msra.mxu0 0
      %534 = vmatprep.mubr.bf16.mxu0 0
      %535 = vmatmul.mubr.bf16.gmra.mrb[0].mxu0 %v334
      %v536 = vpop.f32.mrb[0].mxu0
      %v537 = vadd.f32 %v301, %v536
      %v538 = vpop.f32.mrb[0].mxu0
      %v539 = vadd.f32 %v305, %v538
      %v540 = vpop.f32.mrb[0].mxu0
      %v541 = vadd.f32 %v301, %v540
      %v542 = vpop.f32.mrb[0].mxu0
      %v543 = vadd.f32 %v305, %v542
      %544 = vmatprep.mubr.bf16.mxu0 0
      %545 = vmatmul.mubr.bf16.gmra.mrb[0].mxu0 %v335
      %v546 = vpop.f32.mrb[0].mxu0
      %v547 = vadd.f32 %v301, %v546
      %v548 = vpop.f32.mrb[0].mxu0
      %v549 = vadd.f32 %v305, %v548
      %v550 = vpop.f32.mrb[0].mxu0
      %v551 = vadd.f32 %v301, %v550
      %v552 = vpop.f32.mrb[0].mxu0
      %v553 = vadd.f32 %v305, %v552
      %554 = vmatprep.mubr.bf16.mxu0 0
      %555 = vmatmul.mubr.bf16.gmra.mrb[0].mxu0 %v336
      %v556 = vpop.f32.mrb[0].mxu0
      %v557 = vadd.f32 %v301, %v556
      %v558 = vpop.f32.mrb[0].mxu0
      %v559 = vadd.f32 %v305, %v558
      %v560 = vpop.f32.mrb[0].mxu0
      %v561 = vadd.f32 %v301, %v560
      %v562 = vpop.f32.mrb[0].mxu0
      %v563 = vadd.f32 %v305, %v562
      %564 = vmatprep.mubr.bf16.mxu0 0
      %565 = vmatmul.mubr.bf16.gmra.mrb[0].mxu0 %v337
      %v566 = vpop.f32.mrb[0].mxu0
      %v567 = vadd.f32 %v301, %v566
      %v568 = vpop.f32.mrb[0].mxu0
      %v569 = vadd.f32 %v305, %v568
      %v570 = vpop.f32.mrb[0].mxu0
      %v571 = vadd.f32 %v301, %v570
      %v572 = vpop.f32.mrb[0].mxu0
      %v573 = vadd.f32 %v305, %v572
      %574 = vdwg.mxu0
      %575 = vmatprep.subr.bf16.mxu0 %v441
      %576 = vmatpush1.bf16.msra.mxu0 %v440
      %577 = vmatprep.subr.bf16.mxu0 %v445
      %578 = vmatpush1.bf16.msra.mxu0 %v444
      %579 = vmatprep.subr.bf16.mxu0 %v449
      %580 = vmatpush1.bf16.msra.mxu0 %v448
      %581 = vmatprep.subr.bf16.mxu0 %v453
      %582 = vmatpush1.bf16.msra.mxu0 %v452
      %583 = vmatprep.subr.bf16.mxu0 %v457
      %584 = vmatpush1.bf16.msra.mxu0 %v456
      %585 = vmatprep.subr.bf16.mxu0 %v461
      %586 = vmatpush1.bf16.msra.mxu0 %v460
      %587 = vmatprep.subr.bf16.mxu0 %v465
      %588 = vmatpush1.bf16.msra.mxu0 %v464
      %589 = vmatprep.subr.bf16.mxu0 %v469
      %590 = vmatpush1.bf16.msra.mxu0 %v468
      %591 = vmatprep.subr.bf16.mxu0 0
      %592 = vmatpush1.bf16.msra.mxu0 0
      %593 = vmatprep.subr.bf16.mxu0 0
      %594 = vmatpush1.bf16.msra.mxu0 0
      %595 = vmatprep.subr.bf16.mxu0 0
      %596 = vmatpush1.bf16.msra.mxu0 0
      %597 = vmatprep.subr.bf16.mxu0 0
      %598 = vmatpush1.bf16.msra.mxu0 0
      %599 = vmatprep.subr.bf16.mxu0 0
      %600 = vmatpush1.bf16.msra.mxu0 0
      %601 = vmatprep.subr.bf16.mxu0 0
      %602 = vmatpush1.bf16.msra.mxu0 0
      %603 = vmatprep.subr.bf16.mxu0 0
      %604 = vmatpush1.bf16.msra.mxu0 0
      %605 = vmatprep.subr.bf16.mxu0 0
      %606 = vmatpush1.bf16.msra.mxu0 0
      %607 = vmatprep.mubr.bf16.mxu0 0
      %608 = vmatmul.mubr.bf16.gmra.mrb[0].mxu0 %v334
      %v609 = vpop.f32.mrb[0].mxu0
      %v610 = vadd.f32 %v309, %v609
      %v611 = vpop.f32.mrb[0].mxu0
      %v612 = vadd.f32 %v313, %v611
      %v613 = vpop.f32.mrb[0].mxu0
      %v614 = vadd.f32 %v309, %v613
      %v615 = vpop.f32.mrb[0].mxu0
      %v616 = vadd.f32 %v313, %v615
      %617 = vmatprep.mubr.bf16.mxu0 0
      %618 = vmatmul.mubr.bf16.gmra.mrb[0].mxu0 %v335
      %v619 = vpop.f32.mrb[0].mxu0
      %v620 = vadd.f32 %v309, %v619
      %v621 = vpop.f32.mrb[0].mxu0
      %v622 = vadd.f32 %v313, %v621
      %v623 = vpop.f32.mrb[0].mxu0
      %v624 = vadd.f32 %v309, %v623
      %v625 = vpop.f32.mrb[0].mxu0
      %v626 = vadd.f32 %v313, %v625
      %627 = vmatprep.mubr.bf16.mxu0 0
      %628 = vmatmul.mubr.bf16.gmra.mrb[0].mxu0 %v336
      %v629 = vpop.f32.mrb[0].mxu0
      %v630 = vadd.f32 %v309, %v629
      %v631 = vpop.f32.mrb[0].mxu0
      %v632 = vadd.f32 %v313, %v631
      %v633 = vpop.f32.mrb[0].mxu0
      %v634 = vadd.f32 %v309, %v633
      %v635 = vpop.f32.mrb[0].mxu0
      %v636 = vadd.f32 %v313, %v635
      %637 = vmatprep.mubr.bf16.mxu0 0
      %638 = vmatmul.mubr.bf16.gmra.mrb[0].mxu0 %v337
      %v639 = vpop.f32.mrb[0].mxu0
      %v640 = vadd.f32 %v309, %v639
      %v641 = vpop.f32.mrb[0].mxu0
      %v642 = vadd.f32 %v313, %v641
      %v643 = vpop.f32.mrb[0].mxu0
      %v644 = vadd.f32 %v309, %v643
      %v645 = vpop.f32.mrb[0].mxu0
      %v646 = vadd.f32 %v313, %v645
      %647 = vdwg.mxu0
      %v648 = vld [vmem:[%s2] sm:$0xff]
      %v649 = vld [vmem:[%s2 + $0x8] sm:$0xff]
      %v650 = vld [vmem:[%s2 + $0x10] sm:$0xff]
      %v651 = vld [vmem:[%s2 + $0x18] sm:$0xff]
      %v652 = vld [vmem:[%s2 + $0x20] sm:$0xff]
      %v653 = vld [vmem:[%s2 + $0x28] sm:$0xff]
      %v654 = vld [vmem:[%s2 + $0x30] sm:$0xff]
      %v655 = vld [vmem:[%s2 + $0x38] sm:$0xff]
      %v656 = vld [vmem:[%s2 + $0x40] sm:$0xff]
      %v657 = vld [vmem:[%s2 + $0x48] sm:$0xff]
      %v658 = vld [vmem:[%s2 + $0x50] sm:$0xff]
      %v659 = vld [vmem:[%s2 + $0x58] sm:$0xff]
      %v660 = vld [vmem:[%s2 + $0x60] sm:$0xff]
      %v661 = vld [vmem:[%s2 + $0x68] sm:$0xff]
      %v662 = vld [vmem:[%s2 + $0x70] sm:$0xff]
      %v663 = vld [vmem:[%s2 + $0x78] sm:$0xff]
      %v664 = vld [vmem:[%s2 + $0x80] sm:$0xff]
      %v665 = vld [vmem:[%s2 + $0x88] sm:$0xff]
      %v666 = vld [vmem:[%s2 + $0x90] sm:$0xff]
      %v667 = vld [vmem:[%s2 + $0x98] sm:$0xff]
      %v668 = vld [vmem:[%s2 + $0xa0] sm:$0xff]
      %v669 = vld [vmem:[%s2 + $0xa8] sm:$0xff]
      %v670 = vld [vmem:[%s2 + $0xb0] sm:$0xff]
      %v671 = vld [vmem:[%s2 + $0xb8] sm:$0xff]
      %v672 = vld [vmem:[%s2 + $0xc0] sm:$0xff]
      %v673 = vld [vmem:[%s2 + $0xc8] sm:$0xff]
      %v674 = vld [vmem:[%s2 + $0xd0] sm:$0xff]
      %v675 = vld [vmem:[%s2 + $0xd8] sm:$0xff]
      %v676 = vld [vmem:[%s2 + $0xe0] sm:$0xff]
      %v677 = vld [vmem:[%s2 + $0xe8] sm:$0xff]
      %v678 = vld [vmem:[%s2 + $0xf0] sm:$0xff]
      %v679 = vld [vmem:[%s2 + $0xf8] sm:$0xff]
      %v712 = vunpack.c.l.b16 %v648
      %v713 = vunpack.c.h.b16 %v648
      %v714 = vunpack.c.l.b16 %v649
      %v715 = vunpack.c.h.b16 %v649
      %v716 = vunpack.c.l.b16 %v650
      %v717 = vunpack.c.h.b16 %v650
      %v718 = vunpack.c.l.b16 %v651
      %v719 = vunpack.c.h.b16 %v651
      %v720 = vunpack.c.l.b16 %v652
      %v721 = vunpack.c.h.b16 %v652
      %v722 = vunpack.c.l.b16 %v653
      %v723 = vunpack.c.h.b16 %v653
      %v724 = vunpack.c.l.b16 %v654
      %v725 = vunpack.c.h.b16 %v654
      %v726 = vunpack.c.l.b16 %v655
      %v727 = vunpack.c.h.b16 %v655
      %v728 = vunpack.c.l.b16 %v656
      %v729 = vunpack.c.h.b16 %v656
      %v730 = vunpack.c.l.b16 %v657
      %v731 = vunpack.c.h.b16 %v657
      %v732 = vunpack.c.l.b16 %v658
      %v733 = vunpack.c.h.b16 %v658
      %v734 = vunpack.c.l.b16 %v659
      %v735 = vunpack.c.h.b16 %v659
      %v736 = vunpack.c.l.b16 %v660
      %v737 = vunpack.c.h.b16 %v660
      %v738 = vunpack.c.l.b16 %v661
      %v739 = vunpack.c.h.b16 %v661
      %v740 = vunpack.c.l.b16 %v662
      %v741 = vunpack.c.h.b16 %v662
      %v742 = vunpack.c.l.b16 %v663
      %v743 = vunpack.c.h.b16 %v663
      %v744 = vunpack.c.l.b16 %v664
      %v745 = vunpack.c.h.b16 %v664
      %v746 = vunpack.c.l.b16 %v665
      %v747 = vunpack.c.h.b16 %v665
      %v748 = vunpack.c.l.b16 %v666
      %v749 = vunpack.c.h.b16 %v666
      %v750 = vunpack.c.l.b16 %v667
      %v751 = vunpack.c.h.b16 %v667
      %v752 = vunpack.c.l.b16 %v668
      %v753 = vunpack.c.h.b16 %v668
      %v754 = vunpack.c.l.b16 %v669
      %v755 = vunpack.c.h.b16 %v669
      %v756 = vunpack.c.l.b16 %v670
      %v757 = vunpack.c.h.b16 %v670
      %v758 = vunpack.c.l.b16 %v671
      %v759 = vunpack.c.h.b16 %v671
      %v760 = vunpack.c.l.b16 %v672
      %v761 = vunpack.c.h.b16 %v672
      %v762 = vunpack.c.l.b16 %v673
      %v763 = vunpack.c.h.b16 %v673
      %v764 = vunpack.c.l.b16 %v674
      %v765 = vunpack.c.h.b16 %v674
      %v766 = vunpack.c.l.b16 %v675
      %v767 = vunpack.c.h.b16 %v675
      %v768 = vunpack.c.l.b16 %v676
      %v769 = vunpack.c.h.b16 %v676
      %v770 = vunpack.c.l.b16 %v677
      %v771 = vunpack.c.h.b16 %v677
      %v772 = vunpack.c.l.b16 %v678
      %v773 = vunpack.c.h.b16 %v678
      %v774 = vunpack.c.l.b16 %v679
      %v775 = vunpack.c.h.b16 %v679
      %v776 = vpack.c.b16 %v716, %v712
      %v777 = vpack.c.b16 %v717, %v713
      %v778 = vpack.c.b16 %v718, %v714
      %v779 = vpack.c.b16 %v719, %v715
      %v780 = vpack.c.b16 %v724, %v720
      %v781 = vpack.c.b16 %v725, %v721
      %v782 = vpack.c.b16 %v726, %v722
      %v783 = vpack.c.b16 %v727, %v723
      %v784 = vpack.c.b16 %v732, %v728
      %v785 = vpack.c.b16 %v733, %v729
      %v786 = vpack.c.b16 %v734, %v730
      %v787 = vpack.c.b16 %v735, %v731
      %v788 = vpack.c.b16 %v740, %v736
      %v789 = vpack.c.b16 %v741, %v737
      %v790 = vpack.c.b16 %v742, %v738
      %v791 = vpack.c.b16 %v743, %v739
      %v792 = vpack.c.b16 %v748, %v744
      %v793 = vpack.c.b16 %v749, %v745
      %v794 = vpack.c.b16 %v750, %v746
      %v795 = vpack.c.b16 %v751, %v747
      %v796 = vpack.c.b16 %v756, %v752
      %v797 = vpack.c.b16 %v757, %v753
      %v798 = vpack.c.b16 %v758, %v754
      %v799 = vpack.c.b16 %v759, %v755
      %v800 = vpack.c.b16 %v764, %v760
      %v801 = vpack.c.b16 %v765, %v761
      %v802 = vpack.c.b16 %v766, %v762
      %v803 = vpack.c.b16 %v767, %v763
      %v804 = vpack.c.b16 %v772, %v768
      %v805 = vpack.c.b16 %v773, %v769
      %v806 = vpack.c.b16 %v774, %v770
      %v807 = vpack.c.b16 %v775, %v771
      %840 = vmatprep.subr.bf16.mxu0 %v777
      %841 = vmatpush1.bf16.msra.mxu0 %v776
      %842 = vmatprep.subr.bf16.mxu0 %v781
      %843 = vmatpush1.bf16.msra.mxu0 %v780
      %844 = vmatprep.subr.bf16.mxu0 %v785
      %845 = vmatpush1.bf16.msra.mxu0 %v784
      %846 = vmatprep.subr.bf16.mxu0 %v789
      %847 = vmatpush1.bf16.msra.mxu0 %v788
      %848 = vmatprep.subr.bf16.mxu0 %v793
      %849 = vmatpush1.bf16.msra.mxu0 %v792
      %850 = vmatprep.subr.bf16.mxu0 %v797
      %851 = vmatpush1.bf16.msra.mxu0 %v796
      %852 = vmatprep.subr.bf16.mxu0 %v801
      %853 = vmatpush1.bf16.msra.mxu0 %v800
      %854 = vmatprep.subr.bf16.mxu0 %v805
      %855 = vmatpush1.bf16.msra.mxu0 %v804
      %856 = vmatprep.subr.bf16.mxu0 0
      %857 = vmatpush1.bf16.msra.mxu0 0
      %858 = vmatprep.subr.bf16.mxu0 0
      %859 = vmatpush1.bf16.msra.mxu0 0
      %860 = vmatprep.subr.bf16.mxu0 0
      %861 = vmatpush1.bf16.msra.mxu0 0
      %862 = vmatprep.subr.bf16.mxu0 0
      %863 = vmatpush1.bf16.msra.mxu0 0
      %864 = vmatprep.subr.bf16.mxu0 0
      %865 = vmatpush1.bf16.msra.mxu0 0
      %866 = vmatprep.subr.bf16.mxu0 0
      %867 = vmatpush1.bf16.msra.mxu0 0
      %868 = vmatprep.subr.bf16.mxu0 0
      %869 = vmatpush1.bf16.msra.mxu0 0
      %870 = vmatprep.subr.bf16.mxu0 0
      %871 = vmatpush1.bf16.msra.mxu0 0
      %872 = vmatprep.mubr.bf16.mxu0 0
      %873 = vmatmul.mubr.bf16.gmra.mrb[0].mxu0 0
      %v874 = vpop.f32.mrb[0].mxu0
      %v875 = vadd.f32 0.0, %v874
      %v876 = vpop.f32.mrb[0].mxu0
      %v877 = vadd.f32 0.0, %v876
      %v878 = vpop.f32.mrb[0].mxu0
      %v879 = vpop.f32.mrb[0].mxu0
      %880 = vdwg.mxu0
      %881 = vmatprep.subr.bf16.mxu0 %v779
      %882 = vmatpush1.bf16.msra.mxu0 %v778
      %883 = vmatprep.subr.bf16.mxu0 %v783
      %884 = vmatpush1.bf16.msra.mxu0 %v782
      %885 = vmatprep.subr.bf16.mxu0 %v787
      %886 = vmatpush1.bf16.msra.mxu0 %v786
      %887 = vmatprep.subr.bf16.mxu0 %v791
      %888 = vmatpush1.bf16.msra.mxu0 %v790
      %889 = vmatprep.subr.bf16.mxu0 %v795
      %890 = vmatpush1.bf16.msra.mxu0 %v794
      %891 = vmatprep.subr.bf16.mxu0 %v799
      %892 = vmatpush1.bf16.msra.mxu0 %v798
      %893 = vmatprep.subr.bf16.mxu0 %v803
      %894 = vmatpush1.bf16.msra.mxu0 %v802
      %895 = vmatprep.subr.bf16.mxu0 %v807
      %896 = vmatpush1.bf16.msra.mxu0 %v806
      %897 = vmatprep.subr.bf16.mxu0 0
      %898 = vmatpush1.bf16.msra.mxu0 0
      %899 = vmatprep.subr.bf16.mxu0 0
      %900 = vmatpush1.bf16.msra.mxu0 0
      %901 = vmatprep.subr.bf16.mxu0 0
      %902 = vmatpush1.bf16.msra.mxu0 0
      %903 = vmatprep.subr.bf16.mxu0 0
      %904 = vmatpush1.bf16.msra.mxu0 0
      %905 = vmatprep.subr.bf16.mxu0 0
      %906 = vmatpush1.bf16.msra.mxu0 0
      %907 = vmatprep.subr.bf16.mxu0 0
      %908 = vmatpush1.bf16.msra.mxu0 0
      %909 = vmatprep.subr.bf16.mxu0 0
      %910 = vmatpush1.bf16.msra.mxu0 0
      %911 = vmatprep.subr.bf16.mxu0 0
      %912 = vmatpush1.bf16.msra.mxu0 0
      %913 = vmatprep.mubr.bf16.mxu0 0
      %914 = vmatmul.mubr.bf16.gmra.mrb[0].mxu0 0
      %v915 = vpop.f32.mrb[0].mxu0
      %v916 = vadd.f32 0.0, %v915
      %v917 = vpop.f32.mrb[0].mxu0
      %v918 = vadd.f32 0.0, %v917
      %v919 = vpop.f32.mrb[0].mxu0
      %v920 = vpop.f32.mrb[0].mxu0
      %921 = vdwg.mxu0
      %v922 = vadd.f32 %v537, %v875
      %v923 = vadd.f32 %v539, %v877
      %v924 = vadd.f32 %v610, %v916
      %v925 = vadd.f32 %v612, %v918
      %v926 = vxor.u32 %v922, 2147483648
      %v927 = vxor.u32 %v923, 2147483648
      %v928 = vmul.f32 %v926, 1.442695
      %v929 = vpow.pop %v928
      %v930 = vmul.f32 %v927, 1.442695
      %v931 = vpow.pop %v930
      %v932 = vadd.f32 %v929, 1.0
      %v933 = vadd.f32 %v931, 1.0
      %v934 = vrcp.pop %v932
      %v935 = vmul.f32 1.0, %v934
      %v936 = vrcp.pop %v933
      %v937 = vmul.f32 1.0, %v936
      %v938 = vtanh.pop %v924
      %v939 = vxor.u32 %v925, 2147483648
      %v940 = vmul.f32 %v939, 1.442695
      %v941 = vpow.pop %v940
      %v942 = vadd.f32 %v941, 1.0
      %v943 = vrcp.pop %v942
      %v944 = vmul.f32 1.0, %v943
      %v945 = vmul.f32 %v937, 0.0
      %v946 = vmul.f32 %v935, %v938
      %v947 = vadd.f32 %v945, %v946
      %v948 = vtanh.pop %v947
      %v949 = vmul.f32 %v944, %v948
      %950 = vst [vmem:[#allocation2] sm:$0xff] %v949
      %v951 = vpack.c.bf16 %v949, %v949
      %952 = vmatprep.subr.bf16.mxu0 %v777
      %953 = vmatpush1.bf16.msra.mxu0 %v776
      %954 = vmatprep.subr.bf16.mxu0 %v781
      %955 = vmatpush1.bf16.msra.mxu0 %v780
      %956 = vmatprep.subr.bf16.mxu0 %v785
      %957 = vmatpush1.bf16.msra.mxu0 %v784
      %958 = vmatprep.subr.bf16.mxu0 %v789
      %959 = vmatpush1.bf16.msra.mxu0 %v788
      %960 = vmatprep.subr.bf16.mxu0 %v793
      %961 = vmatpush1.bf16.msra.mxu0 %v792
      %962 = vmatprep.subr.bf16.mxu0 %v797
      %963 = vmatpush1.bf16.msra.mxu0 %v796
      %964 = vmatprep.subr.bf16.mxu0 %v801
      %965 = vmatpush1.bf16.msra.mxu0 %v800
      %966 = vmatprep.subr.bf16.mxu0 %v805
      %967 = vmatpush1.bf16.msra.mxu0 %v804
      %968 = vmatprep.subr.bf16.mxu0 0
      %969 = vmatpush1.bf16.msra.mxu0 0
      %970 = vmatprep.subr.bf16.mxu0 0
      %971 = vmatpush1.bf16.msra.mxu0 0
      %972 = vmatprep.subr.bf16.mxu0 0
      %973 = vmatpush1.bf16.msra.mxu0 0
      %974 = vmatprep.subr.bf16.mxu0 0
      %975 = vmatpush1.bf16.msra.mxu0 0
      %976 = vmatprep.subr.bf16.mxu0 0
      %977 = vmatpush1.bf16.msra.mxu0 0
      %978 = vmatprep.subr.bf16.mxu0 0
      %979 = vmatpush1.bf16.msra.mxu0 0
      %980 = vmatprep.subr.bf16.mxu0 0
      %981 = vmatpush1.bf16.msra.mxu0 0
      %982 = vmatprep.subr.bf16.mxu0 0
      %983 = vmatpush1.bf16.msra.mxu0 0
      %984 = vmatprep.mubr.bf16.mxu0 0
      %985 = vmatmul.mubr.bf16.gmra.mrb[0].mxu0 %v951
      %v986 = vpop.f32.mrb[0].mxu0
      %v987 = vadd.f32 0.0, %v986
      %v988 = vpop.f32.mrb[0].mxu0
      %v989 = vadd.f32 0.0, %v988
      %v990 = vpop.f32.mrb[0].mxu0
      %v991 = vpop.f32.mrb[0].mxu0
      %992 = vdwg.mxu0
      %993 = vmatprep.subr.bf16.mxu0 %v779
      %994 = vmatpush1.bf16.msra.mxu0 %v778
      %995 = vmatprep.subr.bf16.mxu0 %v783
      %996 = vmatpush1.bf16.msra.mxu0 %v782
      %997 = vmatprep.subr.bf16.mxu0 %v787
      %998 = vmatpush1.bf16.msra.mxu0 %v786
      %999 = vmatprep.subr.bf16.mxu0 %v791
      %1000 = vmatpush1.bf16.msra.mxu0 %v790
      %1001 = vmatprep.subr.bf16.mxu0 %v795
      %1002 = vmatpush1.bf16.msra.mxu0 %v794
      %1003 = vmatprep.subr.bf16.mxu0 %v799
      %1004 = vmatpush1.bf16.msra.mxu0 %v798
      %1005 = vmatprep.subr.bf16.mxu0 %v803
      %1006 = vmatpush1.bf16.msra.mxu0 %v802
      %1007 = vmatprep.subr.bf16.mxu0 %v807
      %1008 = vmatpush1.bf16.msra.mxu0 %v806
      %1009 = vmatprep.subr.bf16.mxu0 0
      %1010 = vmatpush1.bf16.msra.mxu0 0
      %1011 = vmatprep.subr.bf16.mxu0 0
      %1012 = vmatpush1.bf16.msra.mxu0 0
      %1013 = vmatprep.subr.bf16.mxu0 0
      %1014 = vmatpush1.bf16.msra.mxu0 0
      %1015 = vmatprep.subr.bf16.mxu0 0
      %1016 = vmatpush1.bf16.msra.mxu0 0
      %1017 = vmatprep.subr.bf16.mxu0 0
      %1018 = vmatpush1.bf16.msra.mxu0 0
      %1019 = vmatprep.subr.bf16.mxu0 0
      %1020 = vmatpush1.bf16.msra.mxu0 0
      %1021 = vmatprep.subr.bf16.mxu0 0
      %1022 = vmatpush1.bf16.msra.mxu0 0
      %1023 = vmatprep.subr.bf16.mxu0 0
      %1024 = vmatpush1.bf16.msra.mxu0 0
      %1025 = vmatprep.mubr.bf16.mxu0 0
      %1026 = vmatmul.mubr.bf16.gmra.mrb[0].mxu0 %v951
      %v1027 = vpop.f32.mrb[0].mxu0
      %v1028 = vadd.f32 0.0, %v1027
      %v1029 = vpop.f32.mrb[0].mxu0
      %v1030 = vadd.f32 0.0, %v1029
      %v1031 = vpop.f32.mrb[0].mxu0
      %v1032 = vpop.f32.mrb[0].mxu0
      %1033 = vdwg.mxu0
      %v1034 = vadd.f32 %v541, %v987
      %v1035 = vadd.f32 %v543, %v989
      %v1036 = vadd.f32 %v614, %v1028
      %v1037 = vadd.f32 %v616, %v1030
      %v1038 = vxor.u32 %v1034, 2147483648
      %v1039 = vxor.u32 %v1035, 2147483648
      %v1040 = vmul.f32 %v1038, 1.442695
      %v1041 = vpow.pop %v1040
      %v1042 = vmul.f32 %v1039, 1.442695
      %v1043 = vpow.pop %v1042
      %v1044 = vadd.f32 %v1041, 1.0
      %v1045 = vadd.f32 %v1043, 1.0
      %v1046 = vrcp.pop %v1044
      %v1047 = vmul.f32 1.0, %v1046
      %v1048 = vrcp.pop %v1045
      %v1049 = vmul.f32 1.0, %v1048
      %v1050 = vtanh.pop %v1036
      %v1051 = vxor.u32 %v1037, 2147483648
      %v1052 = vmul.f32 %v1051, 1.442695
      %v1053 = vpow.pop %v1052
      %v1054 = vadd.f32 %v1053, 1.0
      %v1055 = vrcp.pop %v1054
      %v1056 = vmul.f32 1.0, %v1055
      %v1057 = vmul.f32 %v1049, %v947
      %v1058 = vmul.f32 %v1047, %v1050
      %v1059 = vadd.f32 %v1057, %v1058
      %v1060 = vtanh.pop %v1059
      %v1061 = vmul.f32 %v1056, %v1060
      %1062 = vst [vmem:[#allocation2 + $0x8] sm:$0xff] %v1061
      %v1063 = vpack.c.bf16 %v1061, %v1061
      %1064 = vmatprep.subr.bf16.mxu0 %v777
      %1065 = vmatpush1.bf16.msra.mxu0 %v776
      %1066 = vmatprep.subr.bf16.mxu0 %v781
      %1067 = vmatpush1.bf16.msra.mxu0 %v780
      %1068 = vmatprep.subr.bf16.mxu0 %v785
      %1069 = vmatpush1.bf16.msra.mxu0 %v784
      %1070 = vmatprep.subr.bf16.mxu0 %v789
      %1071 = vmatpush1.bf16.msra.mxu0 %v788
      %1072 = vmatprep.subr.bf16.mxu0 %v793
      %1073 = vmatpush1.bf16.msra.mxu0 %v792
      %1074 = vmatprep.subr.bf16.mxu0 %v797
      %1075 = vmatpush1.bf16.msra.mxu0 %v796
      %1076 = vmatprep.subr.bf16.mxu0 %v801
      %1077 = vmatpush1.bf16.msra.mxu0 %v800
      %1078 = vmatprep.subr.bf16.mxu0 %v805
      %1079 = vmatpush1.bf16.msra.mxu0 %v804
      %1080 = vmatprep.subr.bf16.mxu0 0
      %1081 = vmatpush1.bf16.msra.mxu0 0
      %1082 = vmatprep.subr.bf16.mxu0 0
      %1083 = vmatpush1.bf16.msra.mxu0 0
      %1084 = vmatprep.subr.bf16.mxu0 0
      %1085 = vmatpush1.bf16.msra.mxu0 0
      %1086 = vmatprep.subr.bf16.mxu0 0
      %1087 = vmatpush1.bf16.msra.mxu0 0
      %1088 = vmatprep.subr.bf16.mxu0 0
      %1089 = vmatpush1.bf16.msra.mxu0 0
      %1090 = vmatprep.subr.bf16.mxu0 0
      %1091 = vmatpush1.bf16.msra.mxu0 0
      %1092 = vmatprep.subr.bf16.mxu0 0
      %1093 = vmatpush1.bf16.msra.mxu0 0
      %1094 = vmatprep.subr.bf16.mxu0 0
      %1095 = vmatpush1.bf16.msra.mxu0 0
      %1096 = vmatprep.mubr.bf16.mxu0 0
      %1097 = vmatmul.mubr.bf16.gmra.mrb[0].mxu0 %v1063
      %v1098 = vpop.f32.mrb[0].mxu0
      %v1099 = vadd.f32 0.0, %v1098
      %v1100 = vpop.f32.mrb[0].mxu0
      %v1101 = vadd.f32 0.0, %v1100
      %v1102 = vpop.f32.mrb[0].mxu0
      %v1103 = vpop.f32.mrb[0].mxu0
      %1104 = vdwg.mxu0
      %1105 = vmatprep.subr.bf16.mxu0 %v779
      %1106 = vmatpush1.bf16.msra.mxu0 %v778
      %1107 = vmatprep.subr.bf16.mxu0 %v783
      %1108 = vmatpush1.bf16.msra.mxu0 %v782
      %1109 = vmatprep.subr.bf16.mxu0 %v787
      %1110 = vmatpush1.bf16.msra.mxu0 %v786
      %1111 = vmatprep.subr.bf16.mxu0 %v791
      %1112 = vmatpush1.bf16.msra.mxu0 %v790
      %1113 = vmatprep.subr.bf16.mxu0 %v795
      %1114 = vmatpush1.bf16.msra.mxu0 %v794
      %1115 = vmatprep.subr.bf16.mxu0 %v799
      %1116 = vmatpush1.bf16.msra.mxu0 %v798
      %1117 = vmatprep.subr.bf16.mxu0 %v803
      %1118 = vmatpush1.bf16.msra.mxu0 %v802
      %1119 = vmatprep.subr.bf16.mxu0 %v807
      %1120 = vmatpush1.bf16.msra.mxu0 %v806
      %1121 = vmatprep.subr.bf16.mxu0 0
      %1122 = vmatpush1.bf16.msra.mxu0 0
      %1123 = vmatprep.subr.bf16.mxu0 0
      %1124 = vmatpush1.bf16.msra.mxu0 0
      %1125 = vmatprep.subr.bf16.mxu0 0
      %1126 = vmatpush1.bf16.msra.mxu0 0
      %1127 = vmatprep.subr.bf16.mxu0 0
      %1128 = vmatpush1.bf16.msra.mxu0 0
      %1129 = vmatprep.subr.bf16.mxu0 0
      %1130 = vmatpush1.bf16.msra.mxu0 0
      %1131 = vmatprep.subr.bf16.mxu0 0
      %1132 = vmatpush1.bf16.msra.mxu0 0
      %1133 = vmatprep.subr.bf16.mxu0 0
      %1134 = vmatpush1.bf16.msra.mxu0 0
      %1135 = vmatprep.subr.bf16.mxu0 0
      %1136 = vmatpush1.bf16.msra.mxu0 0
      %1137 = vmatprep.mubr.bf16.mxu0 0
      %1138 = vmatmul.mubr.bf16.gmra.mrb[0].mxu0 %v1063
      %v1139 = vpop.f32.mrb[0].mxu0
      %v1140 = vadd.f32 0.0, %v1139
      %v1141 = vpop.f32.mrb[0].mxu0
      %v1142 = vadd.f32 0.0, %v1141
      %v1143 = vpop.f32.mrb[0].mxu0
      %v1144 = vpop.f32.mrb[0].mxu0
      %1145 = vdwg.mxu0
      %v1146 = vadd.f32 %v547, %v1099
      %v1147 = vadd.f32 %v549, %v1101
      %v1148 = vadd.f32 %v620, %v1140
      %v1149 = vadd.f32 %v622, %v1142
      %v1150 = vxor.u32 %v1146, 2147483648
      %v1151 = vxor.u32 %v1147, 2147483648
      %v1152 = vmul.f32 %v1150, 1.442695
      %v1153 = vpow.pop %v1152
      %v1154 = vmul.f32 %v1151, 1.442695
      %v1155 = vpow.pop %v1154
      %v1156 = vadd.f32 %v1153, 1.0
      %v1157 = vadd.f32 %v1155, 1.0
      %v1158 = vrcp.pop %v1156
      %v1159 = vmul.f32 1.0, %v1158
      %v1160 = vrcp.pop %v1157
      %v1161 = vmul.f32 1.0, %v1160
      %v1162 = vtanh.pop %v1148
      %v1163 = vxor.u32 %v1149, 2147483648
      %v1164 = vmul.f32 %v1163, 1.442695
      %v1165 = vpow.pop %v1164
      %v1166 = vadd.f32 %v1165, 1.0
      %v1167 = vrcp.pop %v1166
      %v1168 = vmul.f32 1.0, %v1167
      %v1169 = vmul.f32 %v1161, %v1059
      %v1170 = vmul.f32 %v1159, %v1162
      %v1171 = vadd.f32 %v1169, %v1170
      %v1172 = vtanh.pop %v1171
      %v1173 = vmul.f32 %v1168, %v1172
      %1174 = vst [vmem:[#allocation2 + $0x10] sm:$0xff] %v1173
      %v1175 = vpack.c.bf16 %v1173, %v1173
      %1176 = vmatprep.subr.bf16.mxu0 %v777
      %1177 = vmatpush1.bf16.msra.mxu0 %v776
      %1178 = vmatprep.subr.bf16.mxu0 %v781
      %1179 = vmatpush1.bf16.msra.mxu0 %v780
      %1180 = vmatprep.subr.bf16.mxu0 %v785
      %1181 = vmatpush1.bf16.msra.mxu0 %v784
      %1182 = vmatprep.subr.bf16.mxu0 %v789
      %1183 = vmatpush1.bf16.msra.mxu0 %v788
      %1184 = vmatprep.subr.bf16.mxu0 %v793
      %1185 = vmatpush1.bf16.msra.mxu0 %v792
      %1186 = vmatprep.subr.bf16.mxu0 %v797
      %1187 = vmatpush1.bf16.msra.mxu0 %v796
      %1188 = vmatprep.subr.bf16.mxu0 %v801
      %1189 = vmatpush1.bf16.msra.mxu0 %v800
      %1190 = vmatprep.subr.bf16.mxu0 %v805
      %1191 = vmatpush1.bf16.msra.mxu0 %v804
      %1192 = vmatprep.subr.bf16.mxu0 0
      %1193 = vmatpush1.bf16.msra.mxu0 0
      %1194 = vmatprep.subr.bf16.mxu0 0
      %1195 = vmatpush1.bf16.msra.mxu0 0
      %1196 = vmatprep.subr.bf16.mxu0 0
      %1197 = vmatpush1.bf16.msra.mxu0 0
      %1198 = vmatprep.subr.bf16.mxu0 0
      %1199 = vmatpush1.bf16.msra.mxu0 0
      %1200 = vmatprep.subr.bf16.mxu0 0
      %1201 = vmatpush1.bf16.msra.mxu0 0
      %1202 = vmatprep.subr.bf16.mxu0 0
      %1203 = vmatpush1.bf16.msra.mxu0 0
      %1204 = vmatprep.subr.bf16.mxu0 0
      %1205 = vmatpush1.bf16.msra.mxu0 0
      %1206 = vmatprep.subr.bf16.mxu0 0
      %1207 = vmatpush1.bf16.msra.mxu0 0
      %1208 = vmatprep.mubr.bf16.mxu0 0
      %1209 = vmatmul.mubr.bf16.gmra.mrb[0].mxu0 %v1175
      %v1210 = vpop.f32.mrb[0].mxu0
      %v1211 = vadd.f32 0.0, %v1210
      %v1212 = vpop.f32.mrb[0].mxu0
      %v1213 = vadd.f32 0.0, %v1212
      %v1214 = vpop.f32.mrb[0].mxu0
      %v1215 = vpop.f32.mrb[0].mxu0
      %1216 = vdwg.mxu0
      %1217 = vmatprep.subr.bf16.mxu0 %v779
      %1218 = vmatpush1.bf16.msra.mxu0 %v778
      %1219 = vmatprep.subr.bf16.mxu0 %v783
      %1220 = vmatpush1.bf16.msra.mxu0 %v782
      %1221 = vmatprep.subr.bf16.mxu0 %v787
      %1222 = vmatpush1.bf16.msra.mxu0 %v786
      %1223 = vmatprep.subr.bf16.mxu0 %v791
      %1224 = vmatpush1.bf16.msra.mxu0 %v790
      %1225 = vmatprep.subr.bf16.mxu0 %v795
      %1226 = vmatpush1.bf16.msra.mxu0 %v794
      %1227 = vmatprep.subr.bf16.mxu0 %v799
      %1228 = vmatpush1.bf16.msra.mxu0 %v798
      %1229 = vmatprep.subr.bf16.mxu0 %v803
      %1230 = vmatpush1.bf16.msra.mxu0 %v802
      %1231 = vmatprep.subr.bf16.mxu0 %v807
      %1232 = vmatpush1.bf16.msra.mxu0 %v806
      %1233 = vmatprep.subr.bf16.mxu0 0
      %1234 = vmatpush1.bf16.msra.mxu0 0
      %1235 = vmatprep.subr.bf16.mxu0 0
      %1236 = vmatpush1.bf16.msra.mxu0 0
      %1237 = vmatprep.subr.bf16.mxu0 0
      %1238 = vmatpush1.bf16.msra.mxu0 0
      %1239 = vmatprep.subr.bf16.mxu0 0
      %1240 = vmatpush1.bf16.msra.mxu0 0
      %1241 = vmatprep.subr.bf16.mxu0 0
      %1242 = vmatpush1.bf16.msra.mxu0 0
      %1243 = vmatprep.subr.bf16.mxu0 0
      %1244 = vmatpush1.bf16.msra.mxu0 0
      %1245 = vmatprep.subr.bf16.mxu0 0
      %1246 = vmatpush1.bf16.msra.mxu0 0
      %1247 = vmatprep.subr.bf16.mxu0 0
      %1248 = vmatpush1.bf16.msra.mxu0 0
      %1249 = vmatprep.mubr.bf16.mxu0 0
      %1250 = vmatmul.mubr.bf16.gmra.mrb[0].mxu0 %v1175
      %v1251 = vpop.f32.mrb[0].mxu0
      %v1252 = vadd.f32 0.0, %v1251
      %v1253 = vpop.f32.mrb[0].mxu0
      %v1254 = vadd.f32 0.0, %v1253
      %v1255 = vpop.f32.mrb[0].mxu0
      %v1256 = vpop.f32.mrb[0].mxu0
      %1257 = vdwg.mxu0
      %v1258 = vadd.f32 %v551, %v1211
      %v1259 = vadd.f32 %v553, %v1213
      %v1260 = vadd.f32 %v624, %v1252
      %v1261 = vadd.f32 %v626, %v1254
      %v1262 = vxor.u32 %v1258, 2147483648
      %v1263 = vxor.u32 %v1259, 2147483648
      %v1264 = vmul.f32 %v1262, 1.442695
      %v1265 = vpow.pop %v1264
      %v1266 = vmul.f32 %v1263, 1.442695
      %v1267 = vpow.pop %v1266
      %v1268 = vadd.f32 %v1265, 1.0
      %v1269 = vadd.f32 %v1267, 1.0
      %v1270 = vrcp.pop %v1268
      %v1271 = vmul.f32 1.0, %v1270
      %v1272 = vrcp.pop %v1269
      %v1273 = vmul.f32 1.0, %v1272
      %v1274 = vtanh.pop %v1260
      %v1275 = vxor.u32 %v1261, 2147483648
      %v1276 = vmul.f32 %v1275, 1.442695
      %v1277 = vpow.pop %v1276
      %v1278 = vadd.f32 %v1277, 1.0
      %v1279 = vrcp.pop %v1278
      %v1280 = vmul.f32 1.0, %v1279
      %v1281 = vmul.f32 %v1273, %v1171
      %v1282 = vmul.f32 %v1271, %v1274
      %v1283 = vadd.f32 %v1281, %v1282
      %v1284 = vtanh.pop %v1283
      %v1285 = vmul.f32 %v1280, %v1284
      %1286 = vst [vmem:[#allocation2 + $0x18] sm:$0xff] %v1285
      %v1287 = vpack.c.bf16 %v1285, %v1285
      %1288 = vmatprep.subr.bf16.mxu0 %v777
      %1289 = vmatpush1.bf16.msra.mxu0 %v776
      %1290 = vmatprep.subr.bf16.mxu0 %v781
      %1291 = vmatpush1.bf16.msra.mxu0 %v780
      %1292 = vmatprep.subr.bf16.mxu0 %v785
      %1293 = vmatpush1.bf16.msra.mxu0 %v784
      %1294 = vmatprep.subr.bf16.mxu0 %v789
      %1295 = vmatpush1.bf16.msra.mxu0 %v788
      %1296 = vmatprep.subr.bf16.mxu0 %v793
      %1297 = vmatpush1.bf16.msra.mxu0 %v792
      %1298 = vmatprep.subr.bf16.mxu0 %v797
      %1299 = vmatpush1.bf16.msra.mxu0 %v796
      %1300 = vmatprep.subr.bf16.mxu0 %v801
      %1301 = vmatpush1.bf16.msra.mxu0 %v800
      %1302 = vmatprep.subr.bf16.mxu0 %v805
      %1303 = vmatpush1.bf16.msra.mxu0 %v804
      %1304 = vmatprep.subr.bf16.mxu0 0
      %1305 = vmatpush1.bf16.msra.mxu0 0
      %1306 = vmatprep.subr.bf16.mxu0 0
      %1307 = vmatpush1.bf16.msra.mxu0 0
      %1308 = vmatprep.subr.bf16.mxu0 0
      %1309 = vmatpush1.bf16.msra.mxu0 0
      %1310 = vmatprep.subr.bf16.mxu0 0
      %1311 = vmatpush1.bf16.msra.mxu0 0
      %1312 = vmatprep.subr.bf16.mxu0 0
      %1313 = vmatpush1.bf16.msra.mxu0 0
      %1314 = vmatprep.subr.bf16.mxu0 0
      %1315 = vmatpush1.bf16.msra.mxu0 0
      %1316 = vmatprep.subr.bf16.mxu0 0
      %1317 = vmatpush1.bf16.msra.mxu0 0
      %1318 = vmatprep.subr.bf16.mxu0 0
      %1319 = vmatpush1.bf16.msra.mxu0 0
      %1320 = vmatprep.mubr.bf16.mxu0 0
      %1321 = vmatmul.mubr.bf16.gmra.mrb[0].mxu0 %v1287
      %v1322 = vpop.f32.mrb[0].mxu0
      %v1323 = vadd.f32 0.0, %v1322
      %v1324 = vpop.f32.mrb[0].mxu0
      %v1325 = vadd.f32 0.0, %v1324
      %v1326 = vpop.f32.mrb[0].mxu0
      %v1327 = vpop.f32.mrb[0].mxu0
      %1328 = vdwg.mxu0
      %1329 = vmatprep.subr.bf16.mxu0 %v779
      %1330 = vmatpush1.bf16.msra.mxu0 %v778
      %1331 = vmatprep.subr.bf16.mxu0 %v783
      %1332 = vmatpush1.bf16.msra.mxu0 %v782
      %1333 = vmatprep.subr.bf16.mxu0 %v787
      %1334 = vmatpush1.bf16.msra.mxu0 %v786
      %1335 = vmatprep.subr.bf16.mxu0 %v791
      %1336 = vmatpush1.bf16.msra.mxu0 %v790
      %1337 = vmatprep.subr.bf16.mxu0 %v795
      %1338 = vmatpush1.bf16.msra.mxu0 %v794
      %1339 = vmatprep.subr.bf16.mxu0 %v799
      %1340 = vmatpush1.bf16.msra.mxu0 %v798
      %1341 = vmatprep.subr.bf16.mxu0 %v803
      %1342 = vmatpush1.bf16.msra.mxu0 %v802
      %1343 = vmatprep.subr.bf16.mxu0 %v807
      %1344 = vmatpush1.bf16.msra.mxu0 %v806
      %1345 = vmatprep.subr.bf16.mxu0 0
      %1346 = vmatpush1.bf16.msra.mxu0 0
      %1347 = vmatprep.subr.bf16.mxu0 0
      %1348 = vmatpush1.bf16.msra.mxu0 0
      %1349 = vmatprep.subr.bf16.mxu0 0
      %1350 = vmatpush1.bf16.msra.mxu0 0
      %1351 = vmatprep.subr.bf16.mxu0 0
      %1352 = vmatpush1.bf16.msra.mxu0 0
      %1353 = vmatprep.subr.bf16.mxu0 0
      %1354 = vmatpush1.bf16.msra.mxu0 0
      %1355 = vmatprep.subr.bf16.mxu0 0
      %1356 = vmatpush1.bf16.msra.mxu0 0
      %1357 = vmatprep.subr.bf16.mxu0 0
      %1358 = vmatpush1.bf16.msra.mxu0 0
      %1359 = vmatprep.subr.bf16.mxu0 0
      %1360 = vmatpush1.bf16.msra.mxu0 0
      %1361 = vmatprep.mubr.bf16.mxu0 0
      %1362 = vmatmul.mubr.bf16.gmra.mrb[0].mxu0 %v1287
      %v1363 = vpop.f32.mrb[0].mxu0
      %v1364 = vadd.f32 0.0, %v1363
      %v1365 = vpop.f32.mrb[0].mxu0
      %v1366 = vadd.f32 0.0, %v1365
      %v1367 = vpop.f32.mrb[0].mxu0
      %v1368 = vpop.f32.mrb[0].mxu0
      %1369 = vdwg.mxu0
      %v1370 = vadd.f32 %v557, %v1323
      %v1371 = vadd.f32 %v559, %v1325
      %v1372 = vadd.f32 %v630, %v1364
      %v1373 = vadd.f32 %v632, %v1366
      %v1374 = vxor.u32 %v1370, 2147483648
      %v1375 = vxor.u32 %v1371, 2147483648
      %v1376 = vmul.f32 %v1374, 1.442695
      %v1377 = vpow.pop %v1376
      %v1378 = vmul.f32 %v1375, 1.442695
      %v1379 = vpow.pop %v1378
      %v1380 = vadd.f32 %v1377, 1.0
      %v1381 = vadd.f32 %v1379, 1.0
      %v1382 = vrcp.pop %v1380
      %v1383 = vmul.f32 1.0, %v1382
      %v1384 = vrcp.pop %v1381
      %v1385 = vmul.f32 1.0, %v1384
      %v1386 = vtanh.pop %v1372
      %v1387 = vxor.u32 %v1373, 2147483648
      %v1388 = vmul.f32 %v1387, 1.442695
      %v1389 = vpow.pop %v1388
      %v1390 = vadd.f32 %v1389, 1.0
      %v1391 = vrcp.pop %v1390
      %v1392 = vmul.f32 1.0, %v1391
      %v1393 = vmul.f32 %v1385, %v1283
      %v1394 = vmul.f32 %v1383, %v1386
      %v1395 = vadd.f32 %v1393, %v1394
      %v1396 = vtanh.pop %v1395
      %v1397 = vmul.f32 %v1392, %v1396
      %1398 = vst [vmem:[#allocation2 + $0x20] sm:$0xff] %v1397
      %v1399 = vpack.c.bf16 %v1397, %v1397
      %1400 = vmatprep.subr.bf16.mxu0 %v777
      %1401 = vmatpush1.bf16.msra.mxu0 %v776
      %1402 = vmatprep.subr.bf16.mxu0 %v781
      %1403 = vmatpush1.bf16.msra.mxu0 %v780
      %1404 = vmatprep.subr.bf16.mxu0 %v785
      %1405 = vmatpush1.bf16.msra.mxu0 %v784
      %1406 = vmatprep.subr.bf16.mxu0 %v789
      %1407 = vmatpush1.bf16.msra.mxu0 %v788
      %1408 = vmatprep.subr.bf16.mxu0 %v793
      %1409 = vmatpush1.bf16.msra.mxu0 %v792
      %1410 = vmatprep.subr.bf16.mxu0 %v797
      %1411 = vmatpush1.bf16.msra.mxu0 %v796
      %1412 = vmatprep.subr.bf16.mxu0 %v801
      %1413 = vmatpush1.bf16.msra.mxu0 %v800
      %1414 = vmatprep.subr.bf16.mxu0 %v805
      %1415 = vmatpush1.bf16.msra.mxu0 %v804
      %1416 = vmatprep.subr.bf16.mxu0 0
      %1417 = vmatpush1.bf16.msra.mxu0 0
      %1418 = vmatprep.subr.bf16.mxu0 0
      %1419 = vmatpush1.bf16.msra.mxu0 0
      %1420 = vmatprep.subr.bf16.mxu0 0
      %1421 = vmatpush1.bf16.msra.mxu0 0
      %1422 = vmatprep.subr.bf16.mxu0 0
      %1423 = vmatpush1.bf16.msra.mxu0 0
      %1424 = vmatprep.subr.bf16.mxu0 0
      %1425 = vmatpush1.bf16.msra.mxu0 0
      %1426 = vmatprep.subr.bf16.mxu0 0
      %1427 = vmatpush1.bf16.msra.mxu0 0
      %1428 = vmatprep.subr.bf16.mxu0 0
      %1429 = vmatpush1.bf16.msra.mxu0 0
      %1430 = vmatprep.subr.bf16.mxu0 0
      %1431 = vmatpush1.bf16.msra.mxu0 0
      %1432 = vmatprep.mubr.bf16.mxu0 0
      %1433 = vmatmul.mubr.bf16.gmra.mrb[0].mxu0 %v1399
      %v1434 = vpop.f32.mrb[0].mxu0
      %v1435 = vadd.f32 0.0, %v1434
      %v1436 = vpop.f32.mrb[0].mxu0
      %v1437 = vadd.f32 0.0, %v1436
      %v1438 = vpop.f32.mrb[0].mxu0
      %v1439 = vpop.f32.mrb[0].mxu0
      %1440 = vdwg.mxu0
      %1441 = vmatprep.subr.bf16.mxu0 %v779
      %1442 = vmatpush1.bf16.msra.mxu0 %v778
      %1443 = vmatprep.subr.bf16.mxu0 %v783
      %1444 = vmatpush1.bf16.msra.mxu0 %v782
      %1445 = vmatprep.subr.bf16.mxu0 %v787
      %1446 = vmatpush1.bf16.msra.mxu0 %v786
      %1447 = vmatprep.subr.bf16.mxu0 %v791
      %1448 = vmatpush1.bf16.msra.mxu0 %v790
      %1449 = vmatprep.subr.bf16.mxu0 %v795
      %1450 = vmatpush1.bf16.msra.mxu0 %v794
      %1451 = vmatprep.subr.bf16.mxu0 %v799
      %1452 = vmatpush1.bf16.msra.mxu0 %v798
      %1453 = vmatprep.subr.bf16.mxu0 %v803
      %1454 = vmatpush1.bf16.msra.mxu0 %v802
      %1455 = vmatprep.subr.bf16.mxu0 %v807
      %1456 = vmatpush1.bf16.msra.mxu0 %v806
      %1457 = vmatprep.subr.bf16.mxu0 0
      %1458 = vmatpush1.bf16.msra.mxu0 0
      %1459 = vmatprep.subr.bf16.mxu0 0
      %1460 = vmatpush1.bf16.msra.mxu0 0
      %1461 = vmatprep.subr.bf16.mxu0 0
      %1462 = vmatpush1.bf16.msra.mxu0 0
      %1463 = vmatprep.subr.bf16.mxu0 0
      %1464 = vmatpush1.bf16.msra.mxu0 0
      %1465 = vmatprep.subr.bf16.mxu0 0
      %1466 = vmatpush1.bf16.msra.mxu0 0
      %1467 = vmatprep.subr.bf16.mxu0 0
      %1468 = vmatpush1.bf16.msra.mxu0 0
      %1469 = vmatprep.subr.bf16.mxu0 0
      %1470 = vmatpush1.bf16.msra.mxu0 0
      %1471 = vmatprep.subr.bf16.mxu0 0
      %1472 = vmatpush1.bf16.msra.mxu0 0
      %1473 = vmatprep.mubr.bf16.mxu0 0
      %1474 = vmatmul.mubr.bf16.gmra.mrb[0].mxu0 %v1399
      %v1475 = vpop.f32.mrb[0].mxu0
      %v1476 = vadd.f32 0.0, %v1475
      %v1477 = vpop.f32.mrb[0].mxu0
      %v1478 = vadd.f32 0.0, %v1477
      %v1479 = vpop.f32.mrb[0].mxu0
      %v1480 = vpop.f32.mrb[0].mxu0
      %1481 = vdwg.mxu0
      %v1482 = vadd.f32 %v561, %v1435
      %v1483 = vadd.f32 %v563, %v1437
      %v1484 = vadd.f32 %v634, %v1476
      %v1485 = vadd.f32 %v636, %v1478
      %v1486 = vxor.u32 %v1482, 2147483648
      %v1487 = vxor.u32 %v1483, 2147483648
      %v1488 = vmul.f32 %v1486, 1.442695
      %v1489 = vpow.pop %v1488
      %v1490 = vmul.f32 %v1487, 1.442695
      %v1491 = vpow.pop %v1490
      %v1492 = vadd.f32 %v1489, 1.0
      %v1493 = vadd.f32 %v1491, 1.0
      %v1494 = vrcp.pop %v1492
      %v1495 = vmul.f32 1.0, %v1494
      %v1496 = vrcp.pop %v1493
      %v1497 = vmul.f32 1.0, %v1496
      %v1498 = vtanh.pop %v1484
      %v1499 = vxor.u32 %v1485, 2147483648
      %v1500 = vmul.f32 %v1499, 1.442695
      %v1501 = vpow.pop %v1500
      %v1502 = vadd.f32 %v1501, 1.0
      %v1503 = vrcp.pop %v1502
      %v1504 = vmul.f32 1.0, %v1503
      %v1505 = vmul.f32 %v1497, %v1395
      %v1506 = vmul.f32 %v1495, %v1498
      %v1507 = vadd.f32 %v1505, %v1506
      %v1508 = vtanh.pop %v1507
      %v1509 = vmul.f32 %v1504, %v1508
      %1510 = vst [vmem:[#allocation2 + $0x28] sm:$0xff] %v1509
      %v1511 = vpack.c.bf16 %v1509, %v1509
      %1512 = vmatprep.subr.bf16.mxu0 %v777
      %1513 = vmatpush1.bf16.msra.mxu0 %v776
      %1514 = vmatprep.subr.bf16.mxu0 %v781
      %1515 = vmatpush1.bf16.msra.mxu0 %v780
      %1516 = vmatprep.subr.bf16.mxu0 %v785
      %1517 = vmatpush1.bf16.msra.mxu0 %v784
      %1518 = vmatprep.subr.bf16.mxu0 %v789
      %1519 = vmatpush1.bf16.msra.mxu0 %v788
      %1520 = vmatprep.subr.bf16.mxu0 %v793
      %1521 = vmatpush1.bf16.msra.mxu0 %v792
      %1522 = vmatprep.subr.bf16.mxu0 %v797
      %1523 = vmatpush1.bf16.msra.mxu0 %v796
      %1524 = vmatprep.subr.bf16.mxu0 %v801
      %1525 = vmatpush1.bf16.msra.mxu0 %v800
      %1526 = vmatprep.subr.bf16.mxu0 %v805
      %1527 = vmatpush1.bf16.msra.mxu0 %v804
      %1528 = vmatprep.subr.bf16.mxu0 0
      %1529 = vmatpush1.bf16.msra.mxu0 0
      %1530 = vmatprep.subr.bf16.mxu0 0
      %1531 = vmatpush1.bf16.msra.mxu0 0
      %1532 = vmatprep.subr.bf16.mxu0 0
      %1533 = vmatpush1.bf16.msra.mxu0 0
      %1534 = vmatprep.subr.bf16.mxu0 0
      %1535 = vmatpush1.bf16.msra.mxu0 0
      %1536 = vmatprep.subr.bf16.mxu0 0
      %1537 = vmatpush1.bf16.msra.mxu0 0
      %1538 = vmatprep.subr.bf16.mxu0 0
      %1539 = vmatpush1.bf16.msra.mxu0 0
      %1540 = vmatprep.subr.bf16.mxu0 0
      %1541 = vmatpush1.bf16.msra.mxu0 0
      %1542 = vmatprep.subr.bf16.mxu0 0
      %1543 = vmatpush1.bf16.msra.mxu0 0
      %1544 = vmatprep.mubr.bf16.mxu0 0
      %1545 = vmatmul.mubr.bf16.gmra.mrb[0].mxu0 %v1511
      %v1546 = vpop.f32.mrb[0].mxu0
      %v1547 = vadd.f32 0.0, %v1546
      %v1548 = vpop.f32.mrb[0].mxu0
      %v1549 = vadd.f32 0.0, %v1548
      %v1550 = vpop.f32.mrb[0].mxu0
      %v1551 = vpop.f32.mrb[0].mxu0
      %1552 = vdwg.mxu0
      %1553 = vmatprep.subr.bf16.mxu0 %v779
      %1554 = vmatpush1.bf16.msra.mxu0 %v778
      %1555 = vmatprep.subr.bf16.mxu0 %v783
      %1556 = vmatpush1.bf16.msra.mxu0 %v782
      %1557 = vmatprep.subr.bf16.mxu0 %v787
      %1558 = vmatpush1.bf16.msra.mxu0 %v786
      %1559 = vmatprep.subr.bf16.mxu0 %v791
      %1560 = vmatpush1.bf16.msra.mxu0 %v790
      %1561 = vmatprep.subr.bf16.mxu0 %v795
      %1562 = vmatpush1.bf16.msra.mxu0 %v794
      %1563 = vmatprep.subr.bf16.mxu0 %v799
      %1564 = vmatpush1.bf16.msra.mxu0 %v798
      %1565 = vmatprep.subr.bf16.mxu0 %v803
      %1566 = vmatpush1.bf16.msra.mxu0 %v802
      %1567 = vmatprep.subr.bf16.mxu0 %v807
      %1568 = vmatpush1.bf16.msra.mxu0 %v806
      %1569 = vmatprep.subr.bf16.mxu0 0
      %1570 = vmatpush1.bf16.msra.mxu0 0
      %1571 = vmatprep.subr.bf16.mxu0 0
      %1572 = vmatpush1.bf16.msra.mxu0 0
      %1573 = vmatprep.subr.bf16.mxu0 0
      %1574 = vmatpush1.bf16.msra.mxu0 0
      %1575 = vmatprep.subr.bf16.mxu0 0
      %1576 = vmatpush1.bf16.msra.mxu0 0
      %1577 = vmatprep.subr.bf16.mxu0 0
      %1578 = vmatpush1.bf16.msra.mxu0 0
      %1579 = vmatprep.subr.bf16.mxu0 0
      %1580 = vmatpush1.bf16.msra.mxu0 0
      %1581 = vmatprep.subr.bf16.mxu0 0
      %1582 = vmatpush1.bf16.msra.mxu0 0
      %1583 = vmatprep.subr.bf16.mxu0 0
      %1584 = vmatpush1.bf16.msra.mxu0 0
      %1585 = vmatprep.mubr.bf16.mxu0 0
      %1586 = vmatmul.mubr.bf16.gmra.mrb[0].mxu0 %v1511
      %v1587 = vpop.f32.mrb[0].mxu0
      %v1588 = vadd.f32 0.0, %v1587
      %v1589 = vpop.f32.mrb[0].mxu0
      %v1590 = vadd.f32 0.0, %v1589
      %v1591 = vpop.f32.mrb[0].mxu0
      %v1592 = vpop.f32.mrb[0].mxu0
      %1593 = vdwg.mxu0
      %v1594 = vadd.f32 %v567, %v1547
      %v1595 = vadd.f32 %v569, %v1549
      %v1596 = vadd.f32 %v640, %v1588
      %v1597 = vadd.f32 %v642, %v1590
      %v1598 = vxor.u32 %v1594, 2147483648
      %v1599 = vxor.u32 %v1595, 2147483648
      %v1600 = vmul.f32 %v1598, 1.442695
      %v1601 = vpow.pop %v1600
      %v1602 = vmul.f32 %v1599, 1.442695
      %v1603 = vpow.pop %v1602
      %v1604 = vadd.f32 %v1601, 1.0
      %v1605 = vadd.f32 %v1603, 1.0
      %v1606 = vrcp.pop %v1604
      %v1607 = vmul.f32 1.0, %v1606
      %v1608 = vrcp.pop %v1605
      %v1609 = vmul.f32 1.0, %v1608
      %v1610 = vtanh.pop %v1596
      %v1611 = vxor.u32 %v1597, 2147483648
      %v1612 = vmul.f32 %v1611, 1.442695
      %v1613 = vpow.pop %v1612
      %v1614 = vadd.f32 %v1613, 1.0
      %v1615 = vrcp.pop %v1614
      %v1616 = vmul.f32 1.0, %v1615
      %v1617 = vmul.f32 %v1609, %v1507
      %v1618 = vmul.f32 %v1607, %v1610
      %v1619 = vadd.f32 %v1617, %v1618
      %v1620 = vtanh.pop %v1619
      %v1621 = vmul.f32 %v1616, %v1620
      %1622 = vst [vmem:[#allocation2 + $0x30] sm:$0xff] %v1621
      %v1623 = vpack.c.bf16 %v1621, %v1621
      %1624 = vmatprep.subr.bf16.mxu0 %v777
      %1625 = vmatpush1.bf16.msra.mxu0 %v776
      %1626 = vmatprep.subr.bf16.mxu0 %v781
      %1627 = vmatpush1.bf16.msra.mxu0 %v780
      %1628 = vmatprep.subr.bf16.mxu0 %v785
      %1629 = vmatpush1.bf16.msra.mxu0 %v784
      %1630 = vmatprep.subr.bf16.mxu0 %v789
      %1631 = vmatpush1.bf16.msra.mxu0 %v788
      %1632 = vmatprep.subr.bf16.mxu0 %v793
      %1633 = vmatpush1.bf16.msra.mxu0 %v792
      %1634 = vmatprep.subr.bf16.mxu0 %v797
      %1635 = vmatpush1.bf16.msra.mxu0 %v796
      %1636 = vmatprep.subr.bf16.mxu0 %v801
      %1637 = vmatpush1.bf16.msra.mxu0 %v800
      %1638 = vmatprep.subr.bf16.mxu0 %v805
      %1639 = vmatpush1.bf16.msra.mxu0 %v804
      %1640 = vmatprep.subr.bf16.mxu0 0
      %1641 = vmatpush1.bf16.msra.mxu0 0
      %1642 = vmatprep.subr.bf16.mxu0 0
      %1643 = vmatpush1.bf16.msra.mxu0 0
      %1644 = vmatprep.subr.bf16.mxu0 0
      %1645 = vmatpush1.bf16.msra.mxu0 0
      %1646 = vmatprep.subr.bf16.mxu0 0
      %1647 = vmatpush1.bf16.msra.mxu0 0
      %1648 = vmatprep.subr.bf16.mxu0 0
      %1649 = vmatpush1.bf16.msra.mxu0 0
      %1650 = vmatprep.subr.bf16.mxu0 0
      %1651 = vmatpush1.bf16.msra.mxu0 0
      %1652 = vmatprep.subr.bf16.mxu0 0
      %1653 = vmatpush1.bf16.msra.mxu0 0
      %1654 = vmatprep.subr.bf16.mxu0 0
      %1655 = vmatpush1.bf16.msra.mxu0 0
      %1656 = vmatprep.mubr.bf16.mxu0 0
      %1657 = vmatmul.mubr.bf16.gmra.mrb[0].mxu0 %v1623
      %v1658 = vpop.f32.mrb[0].mxu0
      %v1659 = vadd.f32 0.0, %v1658
      %v1660 = vpop.f32.mrb[0].mxu0
      %v1661 = vadd.f32 0.0, %v1660
      %v1662 = vpop.f32.mrb[0].mxu0
      %v1663 = vpop.f32.mrb[0].mxu0
      %1664 = vdwg.mxu0
      %1665 = vmatprep.subr.bf16.mxu0 %v779
      %1666 = vmatpush1.bf16.msra.mxu0 %v778
      %1667 = vmatprep.subr.bf16.mxu0 %v783
      %1668 = vmatpush1.bf16.msra.mxu0 %v782
      %1669 = vmatprep.subr.bf16.mxu0 %v787
      %1670 = vmatpush1.bf16.msra.mxu0 %v786
      %1671 = vmatprep.subr.bf16.mxu0 %v791
      %1672 = vmatpush1.bf16.msra.mxu0 %v790
      %1673 = vmatprep.subr.bf16.mxu0 %v795
      %1674 = vmatpush1.bf16.msra.mxu0 %v794
      %1675 = vmatprep.subr.bf16.mxu0 %v799
      %1676 = vmatpush1.bf16.msra.mxu0 %v798
      %1677 = vmatprep.subr.bf16.mxu0 %v803
      %1678 = vmatpush1.bf16.msra.mxu0 %v802
      %1679 = vmatprep.subr.bf16.mxu0 %v807
      %1680 = vmatpush1.bf16.msra.mxu0 %v806
      %1681 = vmatprep.subr.bf16.mxu0 0
      %1682 = vmatpush1.bf16.msra.mxu0 0
      %1683 = vmatprep.subr.bf16.mxu0 0
      %1684 = vmatpush1.bf16.msra.mxu0 0
      %1685 = vmatprep.subr.bf16.mxu0 0
      %1686 = vmatpush1.bf16.msra.mxu0 0
      %1687 = vmatprep.subr.bf16.mxu0 0
      %1688 = vmatpush1.bf16.msra.mxu0 0
      %1689 = vmatprep.subr.bf16.mxu0 0
      %1690 = vmatpush1.bf16.msra.mxu0 0
      %1691 = vmatprep.subr.bf16.mxu0 0
      %1692 = vmatpush1.bf16.msra.mxu0 0
      %1693 = vmatprep.subr.bf16.mxu0 0
      %1694 = vmatpush1.bf16.msra.mxu0 0
      %1695 = vmatprep.subr.bf16.mxu0 0
      %1696 = vmatpush1.bf16.msra.mxu0 0
      %1697 = vmatprep.mubr.bf16.mxu0 0
      %1698 = vmatmul.mubr.bf16.gmra.mrb[0].mxu0 %v1623
      %v1699 = vpop.f32.mrb[0].mxu0
      %v1700 = vadd.f32 0.0, %v1699
      %v1701 = vpop.f32.mrb[0].mxu0
      %v1702 = vadd.f32 0.0, %v1701
      %v1703 = vpop.f32.mrb[0].mxu0
      %v1704 = vpop.f32.mrb[0].mxu0
      %1705 = vdwg.mxu0
      %v1706 = vadd.f32 %v571, %v1659
      %v1707 = vadd.f32 %v573, %v1661
      %v1708 = vadd.f32 %v644, %v1700
      %v1709 = vadd.f32 %v646, %v1702
      %v1710 = vxor.u32 %v1706, 2147483648
      %v1711 = vxor.u32 %v1707, 2147483648
      %v1712 = vmul.f32 %v1710, 1.442695
      %v1713 = vpow.pop %v1712
      %v1714 = vmul.f32 %v1711, 1.442695
      %v1715 = vpow.pop %v1714
      %v1716 = vadd.f32 %v1713, 1.0
      %v1717 = vadd.f32 %v1715, 1.0
      %v1718 = vrcp.pop %v1716
      %v1719 = vmul.f32 1.0, %v1718
      %v1720 = vrcp.pop %v1717
      %v1721 = vmul.f32 1.0, %v1720
      %v1722 = vtanh.pop %v1708
      %v1723 = vxor.u32 %v1709, 2147483648
      %v1724 = vmul.f32 %v1723, 1.442695
      %v1725 = vpow.pop %v1724
      %v1726 = vadd.f32 %v1725, 1.0
      %v1727 = vrcp.pop %v1726
      %v1728 = vmul.f32 1.0, %v1727
      %v1729 = vmul.f32 %v1721, %v1619
      %v1730 = vmul.f32 %v1719, %v1722
      %v1731 = vadd.f32 %v1729, %v1730
      %v1732 = vtanh.pop %v1731
      %v1733 = vmul.f32 %v1728, %v1732
      %1734 = vst [vmem:[#allocation2 + $0x38] sm:$0xff] %v1733
      %v1735 = vld [vmem:[#allocation2] sm:$0xff]
      %v1736 = vld [vmem:[#allocation2 + $0x8] sm:$0xff]
      %v1737 = vld [vmem:[#allocation2 + $0x10] sm:$0xff]
      %v1738 = vld [vmem:[#allocation2 + $0x18] sm:$0xff]
      %v1739 = vld [vmem:[#allocation2 + $0x20] sm:$0xff]
      %v1740 = vld [vmem:[#allocation2 + $0x28] sm:$0xff]
      %v1741 = vld [vmem:[#allocation2 + $0x30] sm:$0xff]
      %v1742 = vld [vmem:[#allocation2 + $0x38] sm:$0xff]
      %v1743 = vpack.c.bf16 %v1736, %v1735
      %v1744 = vpack.c.bf16 %v1738, %v1737
      %v1745 = vpack.c.bf16 %v1740, %v1739
      %v1746 = vpack.c.bf16 %v1742, %v1741
      %v1747 = vld [vmem:[%s4] sm:$0xf]
      %v1748 = vld [vmem:[%s4 + $0x4] sm:$0xf]
      %v1749 = vld [vmem:[%s4 + $0x8] sm:$0xf]
      %v1750 = vld [vmem:[%s4 + $0xc] sm:$0xf]
      %v1751 = vld [vmem:[%s4 + $0x10] sm:$0xf]
      %v1752 = vld [vmem:[%s4 + $0x14] sm:$0xf]
      %v1753 = vld [vmem:[%s4 + $0x18] sm:$0xf]
      %v1754 = vld [vmem:[%s4 + $0x1c] sm:$0xf]
      %v1755 = vld [vmem:[%s4 + $0x20] sm:$0xf]
      %v1756 = vld [vmem:[%s4 + $0x24] sm:$0xf]
      %v1757 = vld [vmem:[%s4 + $0x28] sm:$0xf]
      %v1758 = vld [vmem:[%s4 + $0x2c] sm:$0xf]
      %v1759 = vld [vmem:[%s4 + $0x30] sm:$0xf]
      %v1760 = vld [vmem:[%s4 + $0x34] sm:$0xf]
      %v1761 = vld [vmem:[%s4 + $0x38] sm:$0xf]
      %v1762 = vld [vmem:[%s4 + $0x3c] sm:$0xf]
      %v1763 = vld [vmem:[%s5] sm:$0x1]
      %v1765 = vlaneseq
      %v1766 = vshrl.u32 %v1765, 7
      %v1767 = vsub.s32 0, %v1766
      %v1768 = vrot.slane %v1763, %v1767
      %v1786 = vunpack.c.l.b16 %v1747
      %v1787 = vunpack.c.l.b16 %v1748
      %v1788 = vunpack.c.l.b16 %v1749
      %v1789 = vunpack.c.l.b16 %v1750
      %v1790 = vunpack.c.l.b16 %v1751
      %v1791 = vunpack.c.l.b16 %v1752
      %v1792 = vunpack.c.l.b16 %v1753
      %v1793 = vunpack.c.l.b16 %v1754
      %v1794 = vunpack.c.l.b16 %v1755
      %v1795 = vunpack.c.l.b16 %v1756
      %v1796 = vunpack.c.l.b16 %v1757
      %v1797 = vunpack.c.l.b16 %v1758
      %v1798 = vunpack.c.l.b16 %v1759
      %v1799 = vunpack.c.l.b16 %v1760
      %v1800 = vunpack.c.l.b16 %v1761
      %v1801 = vunpack.c.l.b16 %v1762
      %v1802 = vpack.c.b16 %v1787, %v1786
      %v1803 = vpack.c.b16 %v1789, %v1788
      %v1804 = vpack.c.b16 %v1791, %v1790
      %v1805 = vpack.c.b16 %v1793, %v1792
      %v1806 = vpack.c.b16 %v1795, %v1794
      %v1807 = vpack.c.b16 %v1797, %v1796
      %v1808 = vpack.c.b16 %v1799, %v1798
      %v1809 = vpack.c.b16 %v1801, %v1800
      %1818 = vmatprep.subr.bf16.mxu0 0
      %1819 = vmatpush1.bf16.msra.mxu0 %v1802
      %1820 = vmatprep.subr.bf16.mxu0 0
      %1821 = vmatpush1.bf16.msra.mxu0 %v1803
      %1822 = vmatprep.subr.bf16.mxu0 0
      %1823 = vmatpush1.bf16.msra.mxu0 %v1804
      %1824 = vmatprep.subr.bf16.mxu0 0
      %1825 = vmatpush1.bf16.msra.mxu0 %v1805
      %1826 = vmatprep.subr.bf16.mxu0 0
      %1827 = vmatpush1.bf16.msra.mxu0 %v1806
      %1828 = vmatprep.subr.bf16.mxu0 0
      %1829 = vmatpush1.bf16.msra.mxu0 %v1807
      %1830 = vmatprep.subr.bf16.mxu0 0
      %1831 = vmatpush1.bf16.msra.mxu0 %v1808
      %1832 = vmatprep.subr.bf16.mxu0 0
      %1833 = vmatpush1.bf16.msra.mxu0 %v1809
      %1834 = vmatprep.subr.bf16.mxu0 0
      %1835 = vmatpush1.bf16.msra.mxu0 0
      %1836 = vmatprep.subr.bf16.mxu0 0
      %1837 = vmatpush1.bf16.msra.mxu0 0
      %1838 = vmatprep.subr.bf16.mxu0 0
      %1839 = vmatpush1.bf16.msra.mxu0 0
      %1840 = vmatprep.subr.bf16.mxu0 0
      %1841 = vmatpush1.bf16.msra.mxu0 0
      %1842 = vmatprep.subr.bf16.mxu0 0
      %1843 = vmatpush1.bf16.msra.mxu0 0
      %1844 = vmatprep.subr.bf16.mxu0 0
      %1845 = vmatpush1.bf16.msra.mxu0 0
      %1846 = vmatprep.subr.bf16.mxu0 0
      %1847 = vmatpush1.bf16.msra.mxu0 0
      %1848 = vmatprep.subr.bf16.mxu0 0
      %1849 = vmatpush1.bf16.msra.mxu0 0
      %1850 = vmatprep.mubr.bf16.mxu0 0
      %1851 = vmatmul.mubr.bf16.gmra.mrb[0].mxu0 %v1743
      %v1852 = vpop.f32.mrb[0].mxu0
      %v1853 = vadd.f32 %v1768, %v1852
      %v1854 = vpop.f32.mrb[0].mxu0
      %v1855 = vpop.f32.mrb[0].mxu0
      %v1856 = vadd.f32 %v1768, %v1855
      %v1857 = vpop.f32.mrb[0].mxu0
      %1858 = vmatprep.mubr.bf16.mxu0 0
      %1859 = vmatmul.mubr.bf16.gmra.mrb[0].mxu0 %v1744
      %v1860 = vpop.f32.mrb[0].mxu0
      %v1861 = vadd.f32 %v1768, %v1860
      %v1862 = vpop.f32.mrb[0].mxu0
      %v1863 = vpop.f32.mrb[0].mxu0
      %v1864 = vadd.f32 %v1768, %v1863
      %v1865 = vpop.f32.mrb[0].mxu0
      %1866 = vmatprep.mubr.bf16.mxu0 0
      %1867 = vmatmul.mubr.bf16.gmra.mrb[0].mxu0 %v1745
      %v1868 = vpop.f32.mrb[0].mxu0
      %v1869 = vadd.f32 %v1768, %v1868
      %v1870 = vpop.f32.mrb[0].mxu0
      %v1871 = vpop.f32.mrb[0].mxu0
      %v1872 = vadd.f32 %v1768, %v1871
      %v1873 = vpop.f32.mrb[0].mxu0
      %1874 = vmatprep.mubr.bf16.mxu0 0
      %1875 = vmatmul.mubr.bf16.gmra.mrb[0].mxu0 %v1746
      %v1876 = vpop.f32.mrb[0].mxu0
      %v1877 = vadd.f32 %v1768, %v1876
      %v1878 = vpop.f32.mrb[0].mxu0
      %v1879 = vpop.f32.mrb[0].mxu0
      %v1880 = vadd.f32 %v1768, %v1879
      %v1881 = vpop.f32.mrb[0].mxu0
      %1882 = vdwg.mxu0
      %1883 = vmax.xlane.f32.xlu0 %v1853
      %v1884 = vpop.xlane.xlu0 %1883
      %1885 = vmax.xlane.f32.xlu0 %v1856
      %v1886 = vpop.xlane.xlu0 %1885
      %1887 = vmax.xlane.f32.xlu0 %v1861
      %v1888 = vpop.xlane.xlu0 %1887
      %1889 = vmax.xlane.f32.xlu0 %v1864
      %v1890 = vpop.xlane.xlu0 %1889
      %1891 = vmax.xlane.f32.xlu0 %v1869
      %v1892 = vpop.xlane.xlu0 %1891
      %1893 = vmax.xlane.f32.xlu0 %v1872
      %v1894 = vpop.xlane.xlu0 %1893
      %1895 = vmax.xlane.f32.xlu0 %v1877
      %v1896 = vpop.xlane.xlu0 %1895
      %1897 = vmax.xlane.f32.xlu0 %v1880
      %v1898 = vpop.xlane.xlu0 %1897
      %v1899 = vsub.f32 %v1853, %v1884
      %v1900 = vsub.f32 %v1856, %v1886
      %v1901 = vsub.f32 %v1861, %v1888
      %v1902 = vsub.f32 %v1864, %v1890
      %v1903 = vsub.f32 %v1869, %v1892
      %v1904 = vsub.f32 %v1872, %v1894
      %v1905 = vsub.f32 %v1877, %v1896
      %v1906 = vsub.f32 %v1880, %v1898
      %v1907 = vmul.f32 %v1899, 1.442695
      %v1908 = vpow.pop %v1907
      %v1909 = vmul.f32 %v1900, 1.442695
      %v1910 = vpow.pop %v1909
      %v1911 = vmul.f32 %v1901, 1.442695
      %v1912 = vpow.pop %v1911
      %v1913 = vmul.f32 %v1902, 1.442695
      %v1914 = vpow.pop %v1913
      %v1915 = vmul.f32 %v1903, 1.442695
      %v1916 = vpow.pop %v1915
      %v1917 = vmul.f32 %v1904, 1.442695
      %v1918 = vpow.pop %v1917
      %v1919 = vmul.f32 %v1905, 1.442695
      %v1920 = vpow.pop %v1919
      %v1921 = vmul.f32 %v1906, 1.442695
      %v1922 = vpow.pop %v1921
      %1923 = vadd.xlane.f32.xlu0 %v1908
      %v1924 = vpop.xlane.xlu0 %1923
      %1925 = vadd.xlane.f32.xlu0 %v1910
      %v1926 = vpop.xlane.xlu0 %1925
      %1927 = vadd.xlane.f32.xlu0 %v1912
      %v1928 = vpop.xlane.xlu0 %1927
      %1929 = vadd.xlane.f32.xlu0 %v1914
      %v1930 = vpop.xlane.xlu0 %1929
      %1931 = vadd.xlane.f32.xlu0 %v1916
      %v1932 = vpop.xlane.xlu0 %1931
      %1933 = vadd.xlane.f32.xlu0 %v1918
      %v1934 = vpop.xlane.xlu0 %1933
      %1935 = vadd.xlane.f32.xlu0 %v1920
      %v1936 = vpop.xlane.xlu0 %1935
      %1937 = vadd.xlane.f32.xlu0 %v1922
      %v1938 = vpop.xlane.xlu0 %1937
      %v1939 = vlog2.pop %v1924
      %v1940 = vmul.f32 %v1939, 0.6931472
      %v1941 = vlog2.pop %v1926
      %v1942 = vmul.f32 %v1941, 0.6931472
      %v1943 = vlog2.pop %v1928
      %v1944 = vmul.f32 %v1943, 0.6931472
      %v1945 = vlog2.pop %v1930
      %v1946 = vmul.f32 %v1945, 0.6931472
      %v1947 = vlog2.pop %v1932
      %v1948 = vmul.f32 %v1947, 0.6931472
      %v1949 = vlog2.pop %v1934
      %v1950 = vmul.f32 %v1949, 0.6931472
      %v1951 = vlog2.pop %v1936
      %v1952 = vmul.f32 %v1951, 0.6931472
      %v1953 = vlog2.pop %v1938
      %v1954 = vmul.f32 %v1953, 0.6931472
      %v1955 = vadd.f32 %v1884, %v1940
      %v1956 = vadd.f32 %v1886, %v1942
      %v1957 = vadd.f32 %v1888, %v1944
      %v1958 = vadd.f32 %v1890, %v1946
      %v1959 = vadd.f32 %v1892, %v1948
      %v1960 = vadd.f32 %v1894, %v1950
      %v1961 = vadd.f32 %v1896, %v1952
      %v1962 = vadd.f32 %v1898, %v1954
      %v1963 = vsub.f32 %v1853, %v1955
      %v1964 = vsub.f32 %v1856, %v1956
      %v1965 = vsub.f32 %v1861, %v1957
      %v1966 = vsub.f32 %v1864, %v1958
      %v1967 = vsub.f32 %v1869, %v1959
      %v1968 = vsub.f32 %v1872, %v1960
      %v1969 = vsub.f32 %v1877, %v1961
      %v1970 = vsub.f32 %v1880, %v1962
      %1971 = vst [vmem:[%s253] sm:$0xff] %v1963
      %1972 = vst [vmem:[%s253 + $0x8] sm:$0xff] %v1964
      %1973 = vst [vmem:[%s253 + $0x10] sm:$0xff] %v1965
      %1974 = vst [vmem:[%s253 + $0x18] sm:$0xff] %v1966
      %1975 = vst [vmem:[%s253 + $0x20] sm:$0xff] %v1967
      %1976 = vst [vmem:[%s253 + $0x28] sm:$0xff] %v1968
      %1977 = vst [vmem:[%s253 + $0x30] sm:$0xff] %v1969
      %1978 = vst [vmem:[%s253 + $0x38] sm:$0xff] %v1970
      %s1979 = smul.u32 8, %s17
      %p1980 = scmp.lt.s32.totalorder %s1979, 15
      %s1981 = scalar_select %p1980, %s1979, 15
      %s1982 = smul.addr %s1981, 8
      %s1983 = scalar_lea.vmem %s6, %s1982
      // Predicated region
      $region45: #{lstm_tagger_forward.1} parent=43 // pred_check
        %p1984 = pneg %p166
      $region46: #{lstm_tagger_forward.1} parent=43 // pred_check_branch
        %1986 = sbr.rel (%p1984) target = $region48
      $region47: #{lstm_tagger_forward.1} parent=43 // pred_region
        %s1987 = smul.u32 8, %s17
      $region48: #{lstm_tagger_forward.1} parent=43 // pred_fallthru
        _
    $region44: #{lstm_tagger_forward.1} parent=5 // pred_fallthru
      _
    %p1988 = scmp.le.s32.totalorder 2, %s12
    // Predicated region
    $region49: #{lstm_tagger_forward.1} parent=5 // pred_check
      %p1989 = pneg %p1988
    $region50: #{lstm_tagger_forward.1} parent=5 // pred_check_branch
      %1991 = sbr.rel (%p1989) target = $region52
    $region51: #{lstm_tagger_forward.1} parent=5 // pred_region
      %s1992 = ssub.s32 %s12, 2
      // Predicated region
      $region53: #{lstm_tagger_forward.1} parent=51 // pred_check
        %p1993 = pneg %p172
      $region54: #{lstm_tagger_forward.1} parent=51 // pred_check_branch
        %1995 = sbr.rel (%p1993) target = $region56
      $region55: #{lstm_tagger_forward.1} parent=51 // pred_region
        %s1996 = smul.u32 8, %s18
        %p1997 = scmp.lt.s32.totalorder %s1996, 15
        %s1998 = scalar_select %p1997, %s1996, 15
        %s1999 = smul.addr %s1998, 8
        %s2000 = scalar_lea.vmem %s6, %s1999
      $region56: #{lstm_tagger_forward.1} parent=51 // pred_fallthru
        _
    $region52: #{lstm_tagger_forward.1} parent=5 // pred_fallthru
      _
  $region6: #{lstm_tagger_forward.1} parent=0 // loop_footer
    %s16 = sadd.s32 1, %s12
  $region7: #{lstm_tagger_forward.1} parent=0 // loop_footer_branch
    %11 = sbr.rel target = $region3
  $region8: #{lstm_tagger_forward.1} parent=0 // loop_exit
    _

</llo_original>
